<compile_context>
chip_gen: v6e
topology: v6e:2x2x1
jax: 0.10.0
libtpu: 0.0.40
codegen_flags: <defaults>
</compile_context>

<pallas_src>
import math

import jax
import jax.numpy as jnp
from jax.experimental import pallas as pl
from jax.experimental.pallas import tpu as pltpu

# Model hyper-parameters (small, consistent with the module's shape algebra).
d_model = 32
n_heads = 4
d_k = 8
d_v = 8


def mha_kernel(mask_ref, q_ref, k_ref, v_ref,
               wqkv_ref, bqkv_ref, wo_ref, bo_ref, gamma_ref, beta_ref,
               out_ref, attn_ref):
    Bt, S, D = q_ref.shape
    M = Bt * S
    HDK = n_heads * d_k
    HDV = n_heads * d_v
    cdt = wqkv_ref.dtype            # bf16 compute dtype for MXU operands
    f32 = jnp.float32

    q = q_ref[...]                  # (Bt, S, D) f32
    k = k_ref[...]
    v = v_ref[...]
    resid = q.reshape(M, D)         # residual (hoisted; reused at the end)

    # ---- Fused QKV projection: one MXU matmul --------------------------------
    #   rows = [Q-rows ; K-rows ; V-rows]   (3*M, D)
    #   cols = [W_Q | W_K | W_V]            (D, 3*HDK)
    # Only the diagonal blocks of the product are used.
    xs = jnp.concatenate([q, k, v], axis=0).reshape(3 * M, D)
    y = jnp.dot(xs.astype(cdt), wqkv_ref[...],
                preferred_element_type=f32) + bqkv_ref[...]
    qs = y[0:M, 0:HDK]                               # Q @ W_Q + b_Q   (M, HDK)
    ks = y[M:2 * M, HDK:2 * HDK]                     # K @ W_K + b_K   (M, HDK)
    vs = y[2 * M:3 * M, 2 * HDK:2 * HDK + HDV]       # V @ W_V + b_V   (M, HDV)

    # ---- Scaled dot-product attention ----------------------------------------
    inv_sqrt_dk = jnp.float32(1.0 / math.sqrt(d_k))
    key_masked = (mask_ref[...] != 0)[:, None, :]    # (Bt, 1, S): masked keys
    neg_inf = jnp.float32(-1e9)

    out_acc = jnp.zeros((M, D), f32)                 # projected context accumulator
    for h in range(n_heads):                         # static unroll, n_heads small
        qh = qs[:, h * d_k:(h + 1) * d_k].reshape(Bt, S, d_k)
        kh = ks[:, h * d_k:(h + 1) * d_k].reshape(Bt, S, d_k)
        vh = vs[:, h * d_v:(h + 1) * d_v].reshape(Bt, S, d_v)

        # (Bt, S, S) scores; contraction on the last axis, no transpose needed.
        s = jnp.einsum('bqd,bkd->bqk', qh.astype(cdt), kh.astype(cdt),
                       preferred_element_type=f32) * inv_sqrt_dk
        s = jnp.where(key_masked, neg_inf, s)        # masked_fill_(mask, -1e9)

        # Numerically stable softmax; the reciprocal runs on the EUP slot.
        m = jnp.max(s, axis=-1, keepdims=True)
        e = jnp.exp(s - m)
        a = e * pl.reciprocal(jnp.sum(e, axis=-1, keepdims=True), approx=True)

        attn_ref[:, h, :, :] = a.astype(attn_ref.dtype)     # direct store, no stack

        ctx = jnp.einsum('bqk,bkd->bqd', a.astype(cdt), vh.astype(cdt),
                         preferred_element_type=f32).reshape(M, d_v)
        # Fold the head-concat into the output projection (linearity of W_O).
        out_acc = out_acc + jnp.dot(ctx.astype(cdt),
                                    wo_ref[h * d_v:(h + 1) * d_v, :],
                                    preferred_element_type=f32)

    # ---- Output bias + residual + LayerNorm (batch folded into rows) ---------
    out = out_acc + bo_ref[...] + resid
    mu = jnp.mean(out, axis=-1, keepdims=True)
    xc = out - mu
    var = jnp.mean(xc * xc, axis=-1, keepdims=True)
    out = xc * jax.lax.rsqrt(var + 1e-5)             # EUP rsqrt, PyTorch eps
    out = out * gamma_ref[...] + beta_ref[...]
    out_ref[...] = out.reshape(Bt, S, D).astype(out_ref.dtype)


def multi_head_attention(Q, K, V, key_pad_mask, params, *, batch_tile=None):
    """BERT MultiHeadAttention forward.

    key_pad_mask: (B, S) int32/bool, nonzero => key position is PAD/masked
    (equivalent to the module's (B, S, S) mask built by get_attn_pad_mask).
    Returns (output (B, S, d_model) f32, attn (B, n_heads, S, S) f32).
    """
    B, S, D = Q.shape
    assert D == d_model
    HDK, HDV = n_heads * d_k, n_heads * d_v
    Bt = B if batch_tile is None else batch_tile
    assert B % Bt == 0

    # Host-side parameter fusion / cast (weights hit the MXU in bf16).
    wqkv = jnp.concatenate([params["wq"], params["wk"], params["wv"]],
                           axis=1).astype(jnp.bfloat16)              # (D, 3*HDK)
    bqkv = jnp.concatenate([params["bq"], params["bk"], params["bv"]], axis=1)
    wo = params["wo"].astype(jnp.bfloat16)

    full = lambda shape: pl.BlockSpec(shape, lambda b: (0,) * len(shape))
    in_specs = [
        pl.BlockSpec((Bt, S), lambda b: (b, 0)),          # key-padding mask
        pl.BlockSpec((Bt, S, D), lambda b: (b, 0, 0)),    # Q
        pl.BlockSpec((Bt, S, D), lambda b: (b, 0, 0)),    # K
        pl.BlockSpec((Bt, S, D), lambda b: (b, 0, 0)),    # V
        full((D, 3 * HDK)), full((1, 3 * HDK)),           # fused W_QKV, b_QKV
        full((HDV, D)), full((1, D)),                     # W_O, b_O
        full((1, D)), full((1, D)),                       # LayerNorm gamma, beta
    ]
    out_specs = (
        pl.BlockSpec((Bt, S, D), lambda b: (b, 0, 0)),
        pl.BlockSpec((Bt, n_heads, S, S), lambda b: (b, 0, 0, 0)),
    )
    out_shape = (
        jax.ShapeDtypeStruct((B, S, D), jnp.float32),
        jax.ShapeDtypeStruct((B, n_heads, S, S), jnp.float32),
    )

    # Advisory cost estimate for XLA's scheduler.
    flops = (2 * (3 * B * S) * D * (3 * HDK)                          # fused projection
             + n_heads * (2 * B * S * S * d_k + 2 * B * S * S * d_v)  # attention
             + 2 * B * S * HDV * D                                    # output projection
             + 10 * B * S * D)                                        # LN / residual
    transcendentals = B * n_heads * S * S + B * n_heads * S + B * S
    bytes_accessed = (4 * 3 * B * S * D + 4 * B * S                   # activations + mask
                      + 2 * (D * 3 * HDK + HDV * D)                   # bf16 weights
                      + 4 * (3 * HDK + 3 * D)                         # biases / LN params
                      + 4 * B * S * D + 4 * B * n_heads * S * S)      # outputs

    fn = pl.pallas_call(
        mha_kernel,
        grid=(B // Bt,),
        in_specs=in_specs,
        out_specs=out_specs,
        out_shape=out_shape,
        compiler_params=pltpu.CompilerParams(
            dimension_semantics=("parallel",)),
        cost_estimate=pl.CostEstimate(flops=flops,
                                      transcendentals=transcendentals,
                                      bytes_accessed=bytes_accessed),
    )
    return fn(key_pad_mask, Q, K, V, wqkv, bqkv, wo,
              params["bo"], params["gamma"], params["beta"])


def reference(Q, K, V, key_pad_mask, params):
    """Pure-JAX reference using the same bf16-operand / f32-accumulate policy."""
    bf16, f32 = jnp.bfloat16, jnp.float32
    B, S, D = Q.shape

    def proj(x, w, b):
        return (jnp.dot(x.reshape(B * S, D).astype(bf16), w.astype(bf16),
                        preferred_element_type=f32) + b).reshape(B, S, -1)

    qs = proj(Q, params["wq"], params["bq"]).reshape(B, S, n_heads, d_k).transpose(0, 2, 1, 3)
    ks = proj(K, params["wk"], params["bk"]).reshape(B, S, n_heads, d_k).transpose(0, 2, 1, 3)
    vs = proj(V, params["wv"], params["bv"]).reshape(B, S, n_heads, d_v).transpose(0, 2, 1, 3)

    scores = jnp.einsum("bhqd,bhkd->bhqk", qs.astype(bf16), ks.astype(bf16),
                        preferred_element_type=f32) * (1.0 / math.sqrt(d_k))
    masked = key_pad_mask[:, None, None, :] != 0
    scores = jnp.where(masked, -1e9, scores)
    attn = jax.nn.softmax(scores, axis=-1)
    ctx = jnp.einsum("bhqk,bhkd->bhqd", attn.astype(bf16), vs.astype(bf16),
                     preferred_element_type=f32)
    ctx = ctx.transpose(0, 2, 1, 3).reshape(B * S, n_heads * d_v)
    out = (jnp.dot(ctx.astype(bf16), params["wo"].astype(bf16),
                   preferred_element_type=f32) + params["bo"]).reshape(B, S, D) + Q
    mu = out.mean(-1, keepdims=True)
    var = ((out - mu) ** 2).mean(-1, keepdims=True)
    out = (out - mu) / jnp.sqrt(var + 1e-5) * params["gamma"] + params["beta"]
    return out, attn


if __name__ == "__main__":
    B, S = 2, 8
    key = jax.random.PRNGKey(0)
    kq, kk, kv, k1, k2, k3, k4 = jax.random.split(key, 7)

    Q = jax.random.normal(kq, (B, S, d_model), jnp.float32)
    K = jax.random.normal(kk, (B, S, d_model), jnp.float32)
    V = jax.random.normal(kv, (B, S, d_model), jnp.float32)

    # BERT-style key padding mask: batch 0 has 8 valid tokens, batch 1 has 6.
    valid_len = jnp.array([8, 6])
    key_pad_mask = (jnp.arange(S)[None, :] >= valid_len[:, None]).astype(jnp.int32)  # (B, S)

    scale = 0.1
    params = {
        "wq": scale * jax.random.normal(k1, (d_model, n_heads * d_k), jnp.float32),
        "bq": scale * jnp.ones((1, n_heads * d_k), jnp.float32),
        "wk": scale * jax.random.normal(k2, (d_model, n_heads * d_k), jnp.float32),
        "bk": -scale * jnp.ones((1, n_heads * d_k), jnp.float32),
        "wv": scale * jax.random.normal(k3, (d_model, n_heads * d_v), jnp.float32),
        "bv": jnp.zeros((1, n_heads * d_v), jnp.float32),
        "wo": scale * jax.random.normal(k4, (n_heads * d_v, d_model), jnp.float32),
        "bo": jnp.zeros((1, d_model), jnp.float32),
        "gamma": jnp.ones((1, d_model), jnp.float32),   # LayerNorm weight
        "beta": jnp.zeros((1, d_model), jnp.float32),   # LayerNorm bias
    }

    out, attn = multi_head_attention(Q, K, V, key_pad_mask, params)
    out = jax.block_until_ready(out)
    attn = jax.block_until_ready(attn)

    ref_out, ref_attn = reference(Q, K, V, key_pad_mask, params)
    assert out.shape == (B, S, d_model)
    assert attn.shape == (B, n_heads, S, S)
    # bf16 MXU operands + approx-reciprocal softmax => slightly looser tolerance.
    assert jnp.allclose(out, ref_out, rtol=5e-3, atol=5e-3), \
        float(jnp.max(jnp.abs(out - ref_out)))
    assert jnp.allclose(attn, ref_attn, rtol=5e-3, atol=5e-3), \
        float(jnp.max(jnp.abs(attn - ref_attn)))
    print("KERNEL_OK")
</pallas_src>

<mosaic_0001>
module attributes {stable_mosaic.version = 11 : i64} {
  func.func @mha_kernel(%arg0: i32, %arg1: memref<2x8xi32, #tpu.memory_space<vmem>>, %arg2: memref<2x8x32xf32, #tpu.memory_space<vmem>>, %arg3: memref<2x8x32xf32, #tpu.memory_space<vmem>>, %arg4: memref<2x8x32xf32, #tpu.memory_space<vmem>>, %arg5: memref<32x96xbf16, #tpu.memory_space<vmem>>, %arg6: memref<1x96xf32, #tpu.memory_space<vmem>>, %arg7: memref<32x32xbf16, #tpu.memory_space<vmem>>, %arg8: memref<1x32xf32, #tpu.memory_space<vmem>>, %arg9: memref<1x32xf32, #tpu.memory_space<vmem>>, %arg10: memref<1x32xf32, #tpu.memory_space<vmem>>, %arg11: memref<2x8x32xf32, #tpu.memory_space<vmem>>, %arg12: memref<2x4x8x8xf32, #tpu.memory_space<vmem>>) attributes {dimension_semantics = [#tpu.dimension_semantics<parallel>], iteration_bounds = array<i64: 1>, scalar_prefetch = 0 : i64, scratch_operands = 0 : i64, tpu.core_type = #tpu.core_type<tc>, window_params = [{transform_indices = @transform_0, window_bounds = array<i64: 2, 8>}, {transform_indices = @transform_1, window_bounds = array<i64: 2, 8, 32>}, {transform_indices = @transform_2, window_bounds = array<i64: 2, 8, 32>}, {transform_indices = @transform_3, window_bounds = array<i64: 2, 8, 32>}, {pipeline_mode = #tpu.pipeline_mode<synchronous>, transform_indices = @transform_4, window_bounds = array<i64: 32, 96>}, {pipeline_mode = #tpu.pipeline_mode<synchronous>, transform_indices = @transform_5, window_bounds = array<i64: 1, 96>}, {pipeline_mode = #tpu.pipeline_mode<synchronous>, transform_indices = @transform_6, window_bounds = array<i64: 32, 32>}, {pipeline_mode = #tpu.pipeline_mode<synchronous>, transform_indices = @transform_7, window_bounds = array<i64: 1, 32>}, {pipeline_mode = #tpu.pipeline_mode<synchronous>, transform_indices = @transform_8, window_bounds = array<i64: 1, 32>}, {pipeline_mode = #tpu.pipeline_mode<synchronous>, transform_indices = @transform_9, window_bounds = array<i64: 1, 32>}, {transform_indices = @transform_10, window_bounds = array<i64: 2, 8, 32>}, {transform_indices = @transform_11, window_bounds = array<i64: 2, 4, 8, 8>}]} {
    %c0 = arith.constant 0 : index
    %c0_0 = arith.constant 0 : index
    %c0_1 = arith.constant 0 : index
    %0 = vector.load %arg2[%c0, %c0_0, %c0_1] : memref<2x8x32xf32, #tpu.memory_space<vmem>>, vector<2x8x32xf32>
    %c0_2 = arith.constant 0 : index
    %c0_3 = arith.constant 0 : index
    %c0_4 = arith.constant 0 : index
    %1 = vector.load %arg3[%c0_2, %c0_3, %c0_4] : memref<2x8x32xf32, #tpu.memory_space<vmem>>, vector<2x8x32xf32>
    %c0_5 = arith.constant 0 : index
    %c0_6 = arith.constant 0 : index
    %c0_7 = arith.constant 0 : index
    %2 = vector.load %arg4[%c0_5, %c0_6, %c0_7] : memref<2x8x32xf32, #tpu.memory_space<vmem>>, vector<2x8x32xf32>
    %3 = vector.shape_cast %0 : vector<2x8x32xf32> to vector<16x32xf32>
    %4 = tpu.concatenate %0, %1, %2 in 0 : vector<2x8x32xf32>, vector<2x8x32xf32>, vector<2x8x32xf32> -> vector<6x8x32xf32>
    %5 = vector.shape_cast %4 : vector<6x8x32xf32> to vector<48x32xf32>
    %6 = arith.truncf %5 : vector<48x32xf32> to vector<48x32xbf16>
    %c0_8 = arith.constant 0 : index
    %c0_9 = arith.constant 0 : index
    %7 = vector.load %arg5[%c0_8, %c0_9] : memref<32x96xbf16, #tpu.memory_space<vmem>>, vector<32x96xbf16>
    %cst = arith.constant dense<0.000000e+00> : vector<48x96xf32>
    %8 = tpu.matmul %6, %7, %cst {dimension_numbers = #tpu.dot_dimension_numbers<[1], [0], [0], [1], [0, 0, 1, 1], [], []>} : vector<48x32xbf16>, vector<32x96xbf16>, vector<48x96xf32> -> vector<48x96xf32>
    %c0_10 = arith.constant 0 : index
    %c0_11 = arith.constant 0 : index
    %9 = vector.load %arg6[%c0_10, %c0_11] : memref<1x96xf32, #tpu.memory_space<vmem>>, vector<1x96xf32>
    %10 = vector.broadcast %9 : vector<1x96xf32> to vector<48x96xf32>
    %11 = arith.addf %8, %10 : vector<48x96xf32>
    %12 = vector.extract_strided_slice %11 {offsets = [0, 0], sizes = [16, 32], strides = [1, 1]} : vector<48x96xf32> to vector<16x32xf32>
    %13 = vector.extract_strided_slice %11 {offsets = [16, 32], sizes = [16, 32], strides = [1, 1]} : vector<48x96xf32> to vector<16x32xf32>
    %14 = vector.extract_strided_slice %11 {offsets = [32, 64], sizes = [16, 32], strides = [1, 1]} : vector<48x96xf32> to vector<16x32xf32>
    %c0_12 = arith.constant 0 : index
    %c0_13 = arith.constant 0 : index
    %15 = vector.load %arg1[%c0_12, %c0_13] : memref<2x8xi32, #tpu.memory_space<vmem>>, vector<2x8xi32>
    %c0_i32 = arith.constant 0 : i32
    %16 = vector.broadcast %c0_i32 : i32 to vector<2x8xi32>
    %17 = arith.cmpi ne, %15, %16 : vector<2x8xi32>
    %18 = vector.shape_cast %17 : vector<2x8xi1> to vector<2x1x8xi1>
    %cst_14 = arith.constant 0.000000e+00 : f32
    %19 = vector.broadcast %cst_14 : f32 to vector<16x32xf32>
    %20 = vector.extract_strided_slice %12 {offsets = [0, 0], sizes = [16, 8], strides = [1, 1]} : vector<16x32xf32> to vector<16x8xf32>
    %21 = vector.shape_cast %20 : vector<16x8xf32> to vector<2x8x8xf32>
    %22 = vector.extract_strided_slice %13 {offsets = [0, 0], sizes = [16, 8], strides = [1, 1]} : vector<16x32xf32> to vector<16x8xf32>
    %23 = vector.shape_cast %22 : vector<16x8xf32> to vector<2x8x8xf32>
    %24 = vector.extract_strided_slice %14 {offsets = [0, 0], sizes = [16, 8], strides = [1, 1]} : vector<16x32xf32> to vector<16x8xf32>
    %25 = vector.shape_cast %24 : vector<16x8xf32> to vector<2x8x8xf32>
    %26 = arith.truncf %21 : vector<2x8x8xf32> to vector<2x8x8xbf16>
    %27 = arith.truncf %23 : vector<2x8x8xf32> to vector<2x8x8xbf16>
    "tpu.trace_start"() <{level = 10 : i32, message = "bqd,bkd->bqk"}> : () -> ()
    %cst_15 = arith.constant dense<0.000000e+00> : vector<2x8x8xf32>
    %28 = tpu.matmul %26, %27, %cst_15 {dimension_numbers = #tpu.dot_dimension_numbers<[2], [2], [1], [1], [0, 0, 0, 1, 1, 1], [0], [0]>} : vector<2x8x8xbf16>, vector<2x8x8xbf16>, vector<2x8x8xf32> -> vector<2x8x8xf32>
    "tpu.trace_stop"() : () -> ()
    %cst_16 = arith.constant 0.353553385 : f32
    %29 = vector.broadcast %cst_16 : f32 to vector<2x8x8xf32>
    %30 = arith.mulf %28, %29 : vector<2x8x8xf32>
    %cst_17 = arith.constant -1.000000e+09 : f32
    %31 = vector.shape_cast %18 : vector<2x1x8xi1> to vector<2x1x8xi1>
    %32 = vector.broadcast %31 : vector<2x1x8xi1> to vector<2x8x8xi1>
    %33 = vector.broadcast %cst_17 : f32 to vector<2x8x8xf32>
    %34 = arith.select %32, %33, %30 : vector<2x8x8xi1>, vector<2x8x8xf32>
    %cst_18 = arith.constant dense<0xFF800000> : vector<2x8xf32>
    %35 = vector.multi_reduction <maximumf>, %34, %cst_18 [2] : vector<2x8x8xf32> to vector<2x8xf32>
    %36 = vector.shape_cast %35 : vector<2x8xf32> to vector<2x8x1xf32>
    %37 = vector.broadcast %36 : vector<2x8x1xf32> to vector<2x8x8xf32>
    %38 = arith.subf %34, %37 : vector<2x8x8xf32>
    %39 = math.exp %38 : vector<2x8x8xf32>
    %cst_19 = arith.constant dense<0.000000e+00> : vector<2x8xf32>
    %40 = vector.multi_reduction <add>, %39, %cst_19 [2] : vector<2x8x8xf32> to vector<2x8xf32>
    %41 = vector.shape_cast %40 : vector<2x8xf32> to vector<2x8x1xf32>
    %42 = tpu.reciprocal %41 {approx = true} : vector<2x8x1xf32> -> vector<2x8x1xf32>
    %43 = vector.broadcast %42 : vector<2x8x1xf32> to vector<2x8x8xf32>
    %44 = arith.mulf %39, %43 : vector<2x8x8xf32>
    %c0_20 = arith.constant 0 : index
    %c0_21 = arith.constant 0 : index
    %c0_22 = arith.constant 0 : index
    %c0_23 = arith.constant 0 : index
    %45 = vector.load %arg12[%c0_20, %c0_21, %c0_22, %c0_23] : memref<2x4x8x8xf32, #tpu.memory_space<vmem>>, vector<2x1x8x8xf32>
    %46 = vector.shape_cast %45 : vector<2x1x8x8xf32> to vector<2x8x8xf32>
    %47 = vector.shape_cast %44 : vector<2x8x8xf32> to vector<2x1x8x8xf32>
    tpu.vector_store %arg12[%c0_20, %c0_21, %c0_22, %c0_23], %47 {strides = array<i32>} : memref<2x4x8x8xf32, #tpu.memory_space<vmem>>, vector<2x1x8x8xf32>,
    %48 = arith.truncf %44 : vector<2x8x8xf32> to vector<2x8x8xbf16>
    %49 = arith.truncf %25 : vector<2x8x8xf32> to vector<2x8x8xbf16>
    "tpu.trace_start"() <{level = 10 : i32, message = "bqk,bkd->bqd"}> : () -> ()
    %cst_24 = arith.constant dense<0.000000e+00> : vector<2x8x8xf32>
    %50 = tpu.matmul %48, %49, %cst_24 {dimension_numbers = #tpu.dot_dimension_numbers<[2], [1], [1], [2], [0, 0, 0, 1, 1, 2], [0], [0]>} : vector<2x8x8xbf16>, vector<2x8x8xbf16>, vector<2x8x8xf32> -> vector<2x8x8xf32>
    "tpu.trace_stop"() : () -> ()
    %51 = vector.shape_cast %50 : vector<2x8x8xf32> to vector<16x8xf32>
    %52 = arith.truncf %51 : vector<16x8xf32> to vector<16x8xbf16>
    %c0_25 = arith.constant 0 : index
    %c0_26 = arith.constant 0 : index
    %53 = vector.load %arg7[%c0_25, %c0_26] : memref<32x32xbf16, #tpu.memory_space<vmem>>, vector<8x32xbf16>
    %cst_27 = arith.constant dense<0.000000e+00> : vector<16x32xf32>
    %54 = tpu.matmul %52, %53, %cst_27 {dimension_numbers = #tpu.dot_dimension_numbers<[1], [0], [0], [1], [0, 0, 1, 1], [], []>} : vector<16x8xbf16>, vector<8x32xbf16>, vector<16x32xf32> -> vector<16x32xf32>
    %55 = arith.addf %19, %54 : vector<16x32xf32>
    %56 = vector.extract_strided_slice %12 {offsets = [0, 8], sizes = [16, 8], strides = [1, 1]} : vector<16x32xf32> to vector<16x8xf32>
    %57 = vector.shape_cast %56 : vector<16x8xf32> to vector<2x8x8xf32>
    %58 = vector.extract_strided_slice %13 {offsets = [0, 8], sizes = [16, 8], strides = [1, 1]} : vector<16x32xf32> to vector<16x8xf32>
    %59 = vector.shape_cast %58 : vector<16x8xf32> to vector<2x8x8xf32>
    %60 = vector.extract_strided_slice %14 {offsets = [0, 8], sizes = [16, 8], strides = [1, 1]} : vector<16x32xf32> to vector<16x8xf32>
    %61 = vector.shape_cast %60 : vector<16x8xf32> to vector<2x8x8xf32>
    %62 = arith.truncf %57 : vector<2x8x8xf32> to vector<2x8x8xbf16>
    %63 = arith.truncf %59 : vector<2x8x8xf32> to vector<2x8x8xbf16>
    "tpu.trace_start"() <{level = 10 : i32, message = "bqd,bkd->bqk"}> : () -> ()
    %cst_28 = arith.constant dense<0.000000e+00> : vector<2x8x8xf32>
    %64 = tpu.matmul %62, %63, %cst_28 {dimension_numbers = #tpu.dot_dimension_numbers<[2], [2], [1], [1], [0, 0, 0, 1, 1, 1], [0], [0]>} : vector<2x8x8xbf16>, vector<2x8x8xbf16>, vector<2x8x8xf32> -> vector<2x8x8xf32>
    "tpu.trace_stop"() : () -> ()
    %cst_29 = arith.constant 0.353553385 : f32
    %65 = vector.broadcast %cst_29 : f32 to vector<2x8x8xf32>
    %66 = arith.mulf %64, %65 : vector<2x8x8xf32>
    %cst_30 = arith.constant -1.000000e+09 : f32
    %67 = vector.shape_cast %18 : vector<2x1x8xi1> to vector<2x1x8xi1>
    %68 = vector.broadcast %67 : vector<2x1x8xi1> to vector<2x8x8xi1>
    %69 = vector.broadcast %cst_30 : f32 to vector<2x8x8xf32>
    %70 = arith.select %68, %69, %66 : vector<2x8x8xi1>, vector<2x8x8xf32>
    %cst_31 = arith.constant dense<0xFF800000> : vector<2x8xf32>
    %71 = vector.multi_reduction <maximumf>, %70, %cst_31 [2] : vector<2x8x8xf32> to vector<2x8xf32>
    %72 = vector.shape_cast %71 : vector<2x8xf32> to vector<2x8x1xf32>
    %73 = vector.broadcast %72 : vector<2x8x1xf32> to vector<2x8x8xf32>
    %74 = arith.subf %70, %73 : vector<2x8x8xf32>
    %75 = math.exp %74 : vector<2x8x8xf32>
    %cst_32 = arith.constant dense<0.000000e+00> : vector<2x8xf32>
    %76 = vector.multi_reduction <add>, %75, %cst_32 [2] : vector<2x8x8xf32> to vector<2x8xf32>
    %77 = vector.shape_cast %76 : vector<2x8xf32> to vector<2x8x1xf32>
    %78 = tpu.reciprocal %77 {approx = true} : vector<2x8x1xf32> -> vector<2x8x1xf32>
    %79 = vector.broadcast %78 : vector<2x8x1xf32> to vector<2x8x8xf32>
    %80 = arith.mulf %75, %79 : vector<2x8x8xf32>
    %c0_33 = arith.constant 0 : index
    %c1 = arith.constant 1 : index
    %c0_34 = arith.constant 0 : index
    %c0_35 = arith.constant 0 : index
    %81 = vector.load %arg12[%c0_33, %c1, %c0_34, %c0_35] : memref<2x4x8x8xf32, #tpu.memory_space<vmem>>, vector<2x1x8x8xf32>
    %82 = vector.shape_cast %81 : vector<2x1x8x8xf32> to vector<2x8x8xf32>
    %83 = vector.shape_cast %80 : vector<2x8x8xf32> to vector<2x1x8x8xf32>
    tpu.vector_store %arg12[%c0_33, %c1, %c0_34, %c0_35], %83 {strides = array<i32>} : memref<2x4x8x8xf32, #tpu.memory_space<vmem>>, vector<2x1x8x8xf32>,
    %84 = arith.truncf %80 : vector<2x8x8xf32> to vector<2x8x8xbf16>
    %85 = arith.truncf %61 : vector<2x8x8xf32> to vector<2x8x8xbf16>
    "tpu.trace_start"() <{level = 10 : i32, message = "bqk,bkd->bqd"}> : () -> ()
    %cst_36 = arith.constant dense<0.000000e+00> : vector<2x8x8xf32>
    %86 = tpu.matmul %84, %85, %cst_36 {dimension_numbers = #tpu.dot_dimension_numbers<[2], [1], [1], [2], [0, 0, 0, 1, 1, 2], [0], [0]>} : vector<2x8x8xbf16>, vector<2x8x8xbf16>, vector<2x8x8xf32> -> vector<2x8x8xf32>
    "tpu.trace_stop"() : () -> ()
    %87 = vector.shape_cast %86 : vector<2x8x8xf32> to vector<16x8xf32>
    %88 = arith.truncf %87 : vector<16x8xf32> to vector<16x8xbf16>
    %c8 = arith.constant 8 : index
    %c0_37 = arith.constant 0 : index
    %89 = vector.load %arg7[%c8, %c0_37] : memref<32x32xbf16, #tpu.memory_space<vmem>>, vector<8x32xbf16>
    %cst_38 = arith.constant dense<0.000000e+00> : vector<16x32xf32>
    %90 = tpu.matmul %88, %89, %cst_38 {dimension_numbers = #tpu.dot_dimension_numbers<[1], [0], [0], [1], [0, 0, 1, 1], [], []>} : vector<16x8xbf16>, vector<8x32xbf16>, vector<16x32xf32> -> vector<16x32xf32>
    %91 = arith.addf %55, %90 : vector<16x32xf32>
    %92 = vector.extract_strided_slice %12 {offsets = [0, 16], sizes = [16, 8], strides = [1, 1]} : vector<16x32xf32> to vector<16x8xf32>
    %93 = vector.shape_cast %92 : vector<16x8xf32> to vector<2x8x8xf32>
    %94 = vector.extract_strided_slice %13 {offsets = [0, 16], sizes = [16, 8], strides = [1, 1]} : vector<16x32xf32> to vector<16x8xf32>
    %95 = vector.shape_cast %94 : vector<16x8xf32> to vector<2x8x8xf32>
    %96 = vector.extract_strided_slice %14 {offsets = [0, 16], sizes = [16, 8], strides = [1, 1]} : vector<16x32xf32> to vector<16x8xf32>
    %97 = vector.shape_cast %96 : vector<16x8xf32> to vector<2x8x8xf32>
    %98 = arith.truncf %93 : vector<2x8x8xf32> to vector<2x8x8xbf16>
    %99 = arith.truncf %95 : vector<2x8x8xf32> to vector<2x8x8xbf16>
    "tpu.trace_start"() <{level = 10 : i32, message = "bqd,bkd->bqk"}> : () -> ()
    %cst_39 = arith.constant dense<0.000000e+00> : vector<2x8x8xf32>
    %100 = tpu.matmul %98, %99, %cst_39 {dimension_numbers = #tpu.dot_dimension_numbers<[2], [2], [1], [1], [0, 0, 0, 1, 1, 1], [0], [0]>} : vector<2x8x8xbf16>, vector<2x8x8xbf16>, vector<2x8x8xf32> -> vector<2x8x8xf32>
    "tpu.trace_stop"() : () -> ()
    %cst_40 = arith.constant 0.353553385 : f32
    %101 = vector.broadcast %cst_40 : f32 to vector<2x8x8xf32>
    %102 = arith.mulf %100, %101 : vector<2x8x8xf32>
    %cst_41 = arith.constant -1.000000e+09 : f32
    %103 = vector.shape_cast %18 : vector<2x1x8xi1> to vector<2x1x8xi1>
    %104 = vector.broadcast %103 : vector<2x1x8xi1> to vector<2x8x8xi1>
    %105 = vector.broadcast %cst_41 : f32 to vector<2x8x8xf32>
    %106 = arith.select %104, %105, %102 : vector<2x8x8xi1>, vector<2x8x8xf32>
    %cst_42 = arith.constant dense<0xFF800000> : vector<2x8xf32>
    %107 = vector.multi_reduction <maximumf>, %106, %cst_42 [2] : vector<2x8x8xf32> to vector<2x8xf32>
    %108 = vector.shape_cast %107 : vector<2x8xf32> to vector<2x8x1xf32>
    %109 = vector.broadcast %108 : vector<2x8x1xf32> to vector<2x8x8xf32>
    %110 = arith.subf %106, %109 : vector<2x8x8xf32>
    %111 = math.exp %110 : vector<2x8x8xf32>
    %cst_43 = arith.constant dense<0.000000e+00> : vector<2x8xf32>
    %112 = vector.multi_reduction <add>, %111, %cst_43 [2] : vector<2x8x8xf32> to vector<2x8xf32>
    %113 = vector.shape_cast %112 : vector<2x8xf32> to vector<2x8x1xf32>
    %114 = tpu.reciprocal %113 {approx = true} : vector<2x8x1xf32> -> vector<2x8x1xf32>
    %115 = vector.broadcast %114 : vector<2x8x1xf32> to vector<2x8x8xf32>
    %116 = arith.mulf %111, %115 : vector<2x8x8xf32>
    %c0_44 = arith.constant 0 : index
    %c2 = arith.constant 2 : index
    %c0_45 = arith.constant 0 : index
    %c0_46 = arith.constant 0 : index
    %117 = vector.load %arg12[%c0_44, %c2, %c0_45, %c0_46] : memref<2x4x8x8xf32, #tpu.memory_space<vmem>>, vector<2x1x8x8xf32>
    %118 = vector.shape_cast %117 : vector<2x1x8x8xf32> to vector<2x8x8xf32>
    %119 = vector.shape_cast %116 : vector<2x8x8xf32> to vector<2x1x8x8xf32>
    tpu.vector_store %arg12[%c0_44, %c2, %c0_45, %c0_46], %119 {strides = array<i32>} : memref<2x4x8x8xf32, #tpu.memory_space<vmem>>, vector<2x1x8x8xf32>,
    %120 = arith.truncf %116 : vector<2x8x8xf32> to vector<2x8x8xbf16>
    %121 = arith.truncf %97 : vector<2x8x8xf32> to vector<2x8x8xbf16>
    "tpu.trace_start"() <{level = 10 : i32, message = "bqk,bkd->bqd"}> : () -> ()
    %cst_47 = arith.constant dense<0.000000e+00> : vector<2x8x8xf32>
    %122 = tpu.matmul %120, %121, %cst_47 {dimension_numbers = #tpu.dot_dimension_numbers<[2], [1], [1], [2], [0, 0, 0, 1, 1, 2], [0], [0]>} : vector<2x8x8xbf16>, vector<2x8x8xbf16>, vector<2x8x8xf32> -> vector<2x8x8xf32>
    "tpu.trace_stop"() : () -> ()
    %123 = vector.shape_cast %122 : vector<2x8x8xf32> to vector<16x8xf32>
    %124 = arith.truncf %123 : vector<16x8xf32> to vector<16x8xbf16>
    %c16 = arith.constant 16 : index
    %c0_48 = arith.constant 0 : index
    %125 = vector.load %arg7[%c16, %c0_48] : memref<32x32xbf16, #tpu.memory_space<vmem>>, vector<8x32xbf16>
    %cst_49 = arith.constant dense<0.000000e+00> : vector<16x32xf32>
    %126 = tpu.matmul %124, %125, %cst_49 {dimension_numbers = #tpu.dot_dimension_numbers<[1], [0], [0], [1], [0, 0, 1, 1], [], []>} : vector<16x8xbf16>, vector<8x32xbf16>, vector<16x32xf32> -> vector<16x32xf32>
    %127 = arith.addf %91, %126 : vector<16x32xf32>
    %128 = vector.extract_strided_slice %12 {offsets = [0, 24], sizes = [16, 8], strides = [1, 1]} : vector<16x32xf32> to vector<16x8xf32>
    %129 = vector.shape_cast %128 : vector<16x8xf32> to vector<2x8x8xf32>
    %130 = vector.extract_strided_slice %13 {offsets = [0, 24], sizes = [16, 8], strides = [1, 1]} : vector<16x32xf32> to vector<16x8xf32>
    %131 = vector.shape_cast %130 : vector<16x8xf32> to vector<2x8x8xf32>
    %132 = vector.extract_strided_slice %14 {offsets = [0, 24], sizes = [16, 8], strides = [1, 1]} : vector<16x32xf32> to vector<16x8xf32>
    %133 = vector.shape_cast %132 : vector<16x8xf32> to vector<2x8x8xf32>
    %134 = arith.truncf %129 : vector<2x8x8xf32> to vector<2x8x8xbf16>
    %135 = arith.truncf %131 : vector<2x8x8xf32> to vector<2x8x8xbf16>
    "tpu.trace_start"() <{level = 10 : i32, message = "bqd,bkd->bqk"}> : () -> ()
    %cst_50 = arith.constant dense<0.000000e+00> : vector<2x8x8xf32>
    %136 = tpu.matmul %134, %135, %cst_50 {dimension_numbers = #tpu.dot_dimension_numbers<[2], [2], [1], [1], [0, 0, 0, 1, 1, 1], [0], [0]>} : vector<2x8x8xbf16>, vector<2x8x8xbf16>, vector<2x8x8xf32> -> vector<2x8x8xf32>
    "tpu.trace_stop"() : () -> ()
    %cst_51 = arith.constant 0.353553385 : f32
    %137 = vector.broadcast %cst_51 : f32 to vector<2x8x8xf32>
    %138 = arith.mulf %136, %137 : vector<2x8x8xf32>
    %cst_52 = arith.constant -1.000000e+09 : f32
    %139 = vector.shape_cast %18 : vector<2x1x8xi1> to vector<2x1x8xi1>
    %140 = vector.broadcast %139 : vector<2x1x8xi1> to vector<2x8x8xi1>
    %141 = vector.broadcast %cst_52 : f32 to vector<2x8x8xf32>
    %142 = arith.select %140, %141, %138 : vector<2x8x8xi1>, vector<2x8x8xf32>
    %cst_53 = arith.constant dense<0xFF800000> : vector<2x8xf32>
    %143 = vector.multi_reduction <maximumf>, %142, %cst_53 [2] : vector<2x8x8xf32> to vector<2x8xf32>
    %144 = vector.shape_cast %143 : vector<2x8xf32> to vector<2x8x1xf32>
    %145 = vector.broadcast %144 : vector<2x8x1xf32> to vector<2x8x8xf32>
    %146 = arith.subf %142, %145 : vector<2x8x8xf32>
    %147 = math.exp %146 : vector<2x8x8xf32>
    %cst_54 = arith.constant dense<0.000000e+00> : vector<2x8xf32>
    %148 = vector.multi_reduction <add>, %147, %cst_54 [2] : vector<2x8x8xf32> to vector<2x8xf32>
    %149 = vector.shape_cast %148 : vector<2x8xf32> to vector<2x8x1xf32>
    %150 = tpu.reciprocal %149 {approx = true} : vector<2x8x1xf32> -> vector<2x8x1xf32>
    %151 = vector.broadcast %150 : vector<2x8x1xf32> to vector<2x8x8xf32>
    %152 = arith.mulf %147, %151 : vector<2x8x8xf32>
    %c0_55 = arith.constant 0 : index
    %c3 = arith.constant 3 : index
    %c0_56 = arith.constant 0 : index
    %c0_57 = arith.constant 0 : index
    %153 = vector.load %arg12[%c0_55, %c3, %c0_56, %c0_57] : memref<2x4x8x8xf32, #tpu.memory_space<vmem>>, vector<2x1x8x8xf32>
    %154 = vector.shape_cast %153 : vector<2x1x8x8xf32> to vector<2x8x8xf32>
    %155 = vector.shape_cast %152 : vector<2x8x8xf32> to vector<2x1x8x8xf32>
    tpu.vector_store %arg12[%c0_55, %c3, %c0_56, %c0_57], %155 {strides = array<i32>} : memref<2x4x8x8xf32, #tpu.memory_space<vmem>>, vector<2x1x8x8xf32>,
    %156 = arith.truncf %152 : vector<2x8x8xf32> to vector<2x8x8xbf16>
    %157 = arith.truncf %133 : vector<2x8x8xf32> to vector<2x8x8xbf16>
    "tpu.trace_start"() <{level = 10 : i32, message = "bqk,bkd->bqd"}> : () -> ()
    %cst_58 = arith.constant dense<0.000000e+00> : vector<2x8x8xf32>
    %158 = tpu.matmul %156, %157, %cst_58 {dimension_numbers = #tpu.dot_dimension_numbers<[2], [1], [1], [2], [0, 0, 0, 1, 1, 2], [0], [0]>} : vector<2x8x8xbf16>, vector<2x8x8xbf16>, vector<2x8x8xf32> -> vector<2x8x8xf32>
    "tpu.trace_stop"() : () -> ()
    %159 = vector.shape_cast %158 : vector<2x8x8xf32> to vector<16x8xf32>
    %160 = arith.truncf %159 : vector<16x8xf32> to vector<16x8xbf16>
    %c24 = arith.constant 24 : index
    %c0_59 = arith.constant 0 : index
    %161 = vector.load %arg7[%c24, %c0_59] : memref<32x32xbf16, #tpu.memory_space<vmem>>, vector<8x32xbf16>
    %cst_60 = arith.constant dense<0.000000e+00> : vector<16x32xf32>
    %162 = tpu.matmul %160, %161, %cst_60 {dimension_numbers = #tpu.dot_dimension_numbers<[1], [0], [0], [1], [0, 0, 1, 1], [], []>} : vector<16x8xbf16>, vector<8x32xbf16>, vector<16x32xf32> -> vector<16x32xf32>
    %163 = arith.addf %127, %162 : vector<16x32xf32>
    %c0_61 = arith.constant 0 : index
    %c0_62 = arith.constant 0 : index
    %164 = vector.load %arg8[%c0_61, %c0_62] : memref<1x32xf32, #tpu.memory_space<vmem>>, vector<1x32xf32>
    %165 = vector.broadcast %164 : vector<1x32xf32> to vector<16x32xf32>
    %166 = arith.addf %163, %165 : vector<16x32xf32>
    %167 = arith.addf %166, %3 : vector<16x32xf32>
    %cst_63 = arith.constant dense<0.000000e+00> : vector<16xf32>
    %168 = vector.multi_reduction <add>, %167, %cst_63 [1] : vector<16x32xf32> to vector<16xf32>
    %169 = vector.shape_cast %168 : vector<16xf32> to vector<16x1xf32>
    %cst_64 = arith.constant 3.200000e+01 : f32
    %170 = vector.broadcast %cst_64 : f32 to vector<16x1xf32>
    %171 = arith.divf %169, %170 : vector<16x1xf32>
    %172 = vector.broadcast %171 : vector<16x1xf32> to vector<16x32xf32>
    %173 = arith.subf %167, %172 : vector<16x32xf32>
    %174 = arith.mulf %173, %173 : vector<16x32xf32>
    %cst_65 = arith.constant dense<0.000000e+00> : vector<16xf32>
    %175 = vector.multi_reduction <add>, %174, %cst_65 [1] : vector<16x32xf32> to vector<16xf32>
    %176 = vector.shape_cast %175 : vector<16xf32> to vector<16x1xf32>
    %cst_66 = arith.constant 3.200000e+01 : f32
    %177 = vector.broadcast %cst_66 : f32 to vector<16x1xf32>
    %178 = arith.divf %176, %177 : vector<16x1xf32>
    %cst_67 = arith.constant 9.99999974E-6 : f32
    %179 = vector.broadcast %cst_67 : f32 to vector<16x1xf32>
    %180 = arith.addf %178, %179 : vector<16x1xf32>
    %181 = math.rsqrt %180 : vector<16x1xf32>
    %182 = vector.broadcast %181 : vector<16x1xf32> to vector<16x32xf32>
    %183 = arith.mulf %173, %182 : vector<16x32xf32>
    %c0_68 = arith.constant 0 : index
    %c0_69 = arith.constant 0 : index
    %184 = vector.load %arg9[%c0_68, %c0_69] : memref<1x32xf32, #tpu.memory_space<vmem>>, vector<1x32xf32>
    %185 = vector.broadcast %184 : vector<1x32xf32> to vector<16x32xf32>
    %186 = arith.mulf %183, %185 : vector<16x32xf32>
    %c0_70 = arith.constant 0 : index
    %c0_71 = arith.constant 0 : index
    %187 = vector.load %arg10[%c0_70, %c0_71] : memref<1x32xf32, #tpu.memory_space<vmem>>, vector<1x32xf32>
    %188 = vector.broadcast %187 : vector<1x32xf32> to vector<16x32xf32>
    %189 = arith.addf %186, %188 : vector<16x32xf32>
    %190 = vector.shape_cast %189 : vector<16x32xf32> to vector<2x8x32xf32>
    %c0_72 = arith.constant 0 : index
    %c0_73 = arith.constant 0 : index
    %c0_74 = arith.constant 0 : index
    %191 = vector.load %arg11[%c0_72, %c0_73, %c0_74] : memref<2x8x32xf32, #tpu.memory_space<vmem>>, vector<2x8x32xf32>
    tpu.vector_store %arg11[%c0_72, %c0_73, %c0_74], %190 {strides = array<i32>} : memref<2x8x32xf32, #tpu.memory_space<vmem>>, vector<2x8x32xf32>,
    return
  }
  func.func @transform_0(%arg0: i32) -> (i32, i32) {
    %c0_i32 = arith.constant 0 : i32
    %c0_i32_0 = arith.constant 0 : i32
    return %arg0, %c0_i32 : i32, i32
  }
  func.func @transform_1(%arg0: i32) -> (i32, i32, i32) {
    %c0_i32 = arith.constant 0 : i32
    %c0_i32_0 = arith.constant 0 : i32
    %c0_i32_1 = arith.constant 0 : i32
    return %arg0, %c0_i32, %c0_i32_0 : i32, i32, i32
  }
  func.func @transform_2(%arg0: i32) -> (i32, i32, i32) {
    %c0_i32 = arith.constant 0 : i32
    %c0_i32_0 = arith.constant 0 : i32
    %c0_i32_1 = arith.constant 0 : i32
    return %arg0, %c0_i32, %c0_i32_0 : i32, i32, i32
  }
  func.func @transform_3(%arg0: i32) -> (i32, i32, i32) {
    %c0_i32 = arith.constant 0 : i32
    %c0_i32_0 = arith.constant 0 : i32
    %c0_i32_1 = arith.constant 0 : i32
    return %arg0, %c0_i32, %c0_i32_0 : i32, i32, i32
  }
  func.func @transform_4(%arg0: i32) -> (i32, i32) {
    %c0_i32 = arith.constant 0 : i32
    %c0_i32_0 = arith.constant 0 : i32
    %c0_i32_1 = arith.constant 0 : i32
    return %c0_i32, %c0_i32_0 : i32, i32
  }
  func.func @transform_5(%arg0: i32) -> (i32, i32) {
    %c0_i32 = arith.constant 0 : i32
    %c0_i32_0 = arith.constant 0 : i32
    %c0_i32_1 = arith.constant 0 : i32
    return %c0_i32, %c0_i32_0 : i32, i32
  }
  func.func @transform_6(%arg0: i32) -> (i32, i32) {
    %c0_i32 = arith.constant 0 : i32
    %c0_i32_0 = arith.constant 0 : i32
    %c0_i32_1 = arith.constant 0 : i32
    return %c0_i32, %c0_i32_0 : i32, i32
  }
  func.func @transform_7(%arg0: i32) -> (i32, i32) {
    %c0_i32 = arith.constant 0 : i32
    %c0_i32_0 = arith.constant 0 : i32
    %c0_i32_1 = arith.constant 0 : i32
    return %c0_i32, %c0_i32_0 : i32, i32
  }
  func.func @transform_8(%arg0: i32) -> (i32, i32) {
    %c0_i32 = arith.constant 0 : i32
    %c0_i32_0 = arith.constant 0 : i32
    %c0_i32_1 = arith.constant 0 : i32
    return %c0_i32, %c0_i32_0 : i32, i32
  }
  func.func @transform_9(%arg0: i32) -> (i32, i32) {
    %c0_i32 = arith.constant 0 : i32
    %c0_i32_0 = arith.constant 0 : i32
    %c0_i32_1 = arith.constant 0 : i32
    return %c0_i32, %c0_i32_0 : i32, i32
  }
  func.func @transform_10(%arg0: i32) -> (i32, i32, i32) {
    %c0_i32 = arith.constant 0 : i32
    %c0_i32_0 = arith.constant 0 : i32
    %c0_i32_1 = arith.constant 0 : i32
    return %arg0, %c0_i32, %c0_i32_0 : i32, i32, i32
  }
  func.func @transform_11(%arg0: i32) -> (i32, i32, i32, i32) {
    %c0_i32 = arith.constant 0 : i32
    %c0_i32_0 = arith.constant 0 : i32
    %c0_i32_1 = arith.constant 0 : i32
    %c0_i32_2 = arith.constant 0 : i32
    return %arg0, %c0_i32, %c0_i32_0, %c0_i32_1 : i32, i32, i32, i32
  }
}

</mosaic_0001>

<llo_original>
// kernel: tpu_custom_call.1
$region0: #{tpu_custom_call.1}
  #allocation0 [shape = 'u32[]', space=smem, size = 0x4, offset = 0x4, fixed_abs, tag = 'smem constant byte address 0x4 - core index']
  #allocation1 [shape = 'u32[144,128]{1,0:T(1,128)}', space=vmem, size = 0x12000, scoped, tag = 'internal scratch']
  %s0 = inlined_call_operand.hbm [shape: s32[2,8], index: 0, kind: input, shape index: {}]
  %s1 = inlined_call_operand.hbm [shape: f32[2,8,32], index: 1, kind: input, shape index: {}]
  %s2 = inlined_call_operand.hbm [shape: f32[2,8,32], index: 2, kind: input, shape index: {}]
  %s3 = inlined_call_operand.hbm [shape: f32[2,8,32], index: 3, kind: input, shape index: {}]
  %s4 = inlined_call_operand.hbm [shape: bf16[32,96], index: 4, kind: input, shape index: {}]
  %s5 = inlined_call_operand.vmem [shape: f32[1,96], index: 5, kind: input, shape index: {}]
  %s6 = inlined_call_operand.hbm [shape: bf16[32,32], index: 6, kind: input, shape index: {}]
  %s7 = inlined_call_operand.vmem [shape: f32[1,32], index: 7, kind: input, shape index: {}]
  %s8 = inlined_call_operand.vmem [shape: f32[1,32], index: 8, kind: input, shape index: {}]
  %s9 = inlined_call_operand.vmem [shape: f32[1,32], index: 9, kind: input, shape index: {}]
  %s10 = inlined_call_operand.hbm [shape: f32[2,8,32], index: 10, kind: output, shape index: {0}]
  %s11 = inlined_call_operand.hbm [shape: f32[2,4,8,8], index: 11, kind: output, shape index: {1}]
  %12 = xla_tuple %s10, %s11
  %s13 = sld [smem:[#allocation0]]
  $region82: #{tpu_custom_call.1} parent=0
    _
  %s15 = ssub.s32 1, %s13
  %s16 = scalar_select 0, %s15, %s13
  $region1: #{tpu_custom_call.1} parent=0
    #allocation2 [shape = 'u8[1024]{0}', space=vmem, size = 0x400, scoped, tag = 'input window, operand 0, single buffered']
    #allocation3 [shape = 's32[1]{0}', space=sflag, size = 0x4, scoped, tag = 'scoped memory for tpu_custom_call.1']
    #allocation4 [shape = 's32[1]{0}', space=sflag, size = 0x4, scoped, tag = 'scoped memory for tpu_custom_call.1']
    #allocation5 [shape = 'u8[8192]{0}', space=vmem, size = 0x2000, scoped, tag = 'input window, operand 1, single buffered']
    #allocation6 [shape = 's32[1]{0}', space=sflag, size = 0x4, scoped, tag = 'scoped memory for tpu_custom_call.1']
    #allocation7 [shape = 'u8[8192]{0}', space=vmem, size = 0x2000, scoped, tag = 'input window, operand 2, single buffered']
    #allocation8 [shape = 'u8[8192]{0}', space=vmem, size = 0x2000, scoped, tag = 'input window, operand 3, single buffered']
    #allocation9 [shape = 's32[1]{0}', space=sflag, size = 0x4, scoped, tag = 'scoped memory for tpu_custom_call.1']
    #allocation10 [shape = 'u8[8192]{0}', space=vmem, size = 0x2000, scoped, tag = 'input window, operand 4, single buffered']
    #allocation11 [shape = 'u8[8192]{0}', space=vmem, size = 0x2000, scoped, tag = 'input window, operand 6, single buffered']
    #allocation12 [shape = 's32[1]{0}', space=sflag, size = 0x4, scoped, tag = 'scoped memory for tpu_custom_call.1']
    #allocation13 [shape = 'u8[8192]{0}', space=vmem, size = 0x2000, scoped, tag = 'output window, operand 0, single buffered']
    #allocation14 [shape = 'u8[32768]{0}', space=vmem, size = 0x8000, scoped, tag = 'output window, operand 1, single buffered']
    #allocation15 [shape = 's32[1]{0}', space=sflag, size = 0x4, scoped, tag = 'scoped memory for tpu_custom_call.1']
    %17 = vsyncpa [#allocation3], 0
    %18 = vsyncpa [#allocation6], 0
    %19 = vsyncpa [#allocation9], 0
    %20 = vsyncpa [#allocation12], 0
    %21 = vsyncpa [#allocation4], 0
    %22 = vsyncpa [#allocation15], 0
    // Predicated region
    $region2: #{tpu_custom_call.1} parent=1 // pred_check
      _
    $region3: #{tpu_custom_call.1} parent=1 // pred_check_branch
      %24 = sbr.rel (0) target = $region5
    $region4: #{tpu_custom_call.1} parent=1 // pred_region
      %s26 = ssub.s32 32, 32
      %27 = vsyncadd [#allocation3], %s26
      %s29 = sshll.u32 [#allocation2], 4
      %s30 = int_to_ptr.vmem [resolvable:$true] %s29
      %32 = dma.hbm_to_vmem [thread:$0]  %s0, 32, %s30, [#allocation3]
    $region5: #{tpu_custom_call.1} parent=1 // pred_fallthru
      _
    // Predicated region
    $region6: #{tpu_custom_call.1} parent=1 // pred_check
      _
    $region7: #{tpu_custom_call.1} parent=1 // pred_check_branch
      %34 = sbr.rel (0) target = $region9
    $region8: #{tpu_custom_call.1} parent=1 // pred_region
      %s36 = ssub.s32 256, 256
      %37 = vsyncadd [#allocation6], %s36
      %s38 = sshll.u32 [#allocation5], 4
      %s39 = int_to_ptr.vmem [resolvable:$true] %s38
      %44 = dma.hbm_to_vmem [thread:$0]  %s1, 256, %s39, [#allocation6], 128, 128, 8
    $region9: #{tpu_custom_call.1} parent=1 // pred_fallthru
      _
    // Predicated region
    $region10: #{tpu_custom_call.1} parent=1 // pred_check
      _
    $region11: #{tpu_custom_call.1} parent=1 // pred_check_branch
      %46 = sbr.rel (0) target = $region13
    $region12: #{tpu_custom_call.1} parent=1 // pred_region
      %s48 = ssub.s32 256, 256
      %49 = vsyncadd [#allocation6], %s48
      %s50 = sshll.u32 [#allocation7], 4
      %s51 = int_to_ptr.vmem [resolvable:$true] %s50
      %56 = dma.hbm_to_vmem [thread:$0]  %s2, 256, %s51, [#allocation6], 128, 128, 8
    $region13: #{tpu_custom_call.1} parent=1 // pred_fallthru
      _
    // Predicated region
    $region14: #{tpu_custom_call.1} parent=1 // pred_check
      _
    $region15: #{tpu_custom_call.1} parent=1 // pred_check_branch
      %58 = sbr.rel (0) target = $region17
    $region16: #{tpu_custom_call.1} parent=1 // pred_region
      %s60 = ssub.s32 256, 256
      %61 = vsyncadd [#allocation9], %s60
      %s62 = sshll.u32 [#allocation8], 4
      %s63 = int_to_ptr.vmem [resolvable:$true] %s62
      %68 = dma.hbm_to_vmem [thread:$0]  %s3, 256, %s63, [#allocation9], 128, 128, 8
    $region17: #{tpu_custom_call.1} parent=1 // pred_fallthru
      _
    // Predicated region
    $region18: #{tpu_custom_call.1} parent=1 // pred_check
      _
    $region19: #{tpu_custom_call.1} parent=1 // pred_check_branch
      %70 = sbr.rel (0) target = $region21
    $region20: #{tpu_custom_call.1} parent=1 // pred_region
      %s72 = ssub.s32 256, 256
      %73 = vsyncadd [#allocation9], %s72
      %s74 = sshll.u32 [#allocation10], 4
      %s75 = int_to_ptr.vmem [resolvable:$true] %s74
      %80 = dma.hbm_to_vmem [thread:$0]  %s4, 256, %s75, [#allocation9], 64, 64, 4
    $region21: #{tpu_custom_call.1} parent=1 // pred_fallthru
      _
    // Predicated region
    $region22: #{tpu_custom_call.1} parent=1 // pred_check
      _
    $region23: #{tpu_custom_call.1} parent=1 // pred_check_branch
      %82 = sbr.rel (0) target = $region25
    $region24: #{tpu_custom_call.1} parent=1 // pred_region
      _
    $region25: #{tpu_custom_call.1} parent=1 // pred_fallthru
      _
    // Predicated region
    $region26: #{tpu_custom_call.1} parent=1 // pred_check
      _
    $region27: #{tpu_custom_call.1} parent=1 // pred_check_branch
      %84 = sbr.rel (0) target = $region29
    $region28: #{tpu_custom_call.1} parent=1 // pred_region
      %s86 = ssub.s32 256, 256
      %87 = vsyncadd [#allocation12], %s86
      %s88 = sshll.u32 [#allocation11], 4
      %s89 = int_to_ptr.vmem [resolvable:$true] %s88
      %94 = dma.hbm_to_vmem [thread:$0]  %s6, 256, %s89, [#allocation12], 64, 64, 4
    $region29: #{tpu_custom_call.1} parent=1 // pred_fallthru
      _
    // Predicated region
    $region30: #{tpu_custom_call.1} parent=1 // pred_check
      _
    $region31: #{tpu_custom_call.1} parent=1 // pred_check_branch
      %96 = sbr.rel (0) target = $region33
    $region32: #{tpu_custom_call.1} parent=1 // pred_region
      _
    $region33: #{tpu_custom_call.1} parent=1 // pred_fallthru
      _
    // Predicated region
    $region34: #{tpu_custom_call.1} parent=1 // pred_check
      _
    $region35: #{tpu_custom_call.1} parent=1 // pred_check_branch
      %98 = sbr.rel (0) target = $region37
    $region36: #{tpu_custom_call.1} parent=1 // pred_region
      _
    $region37: #{tpu_custom_call.1} parent=1 // pred_fallthru
      _
    // Predicated region
    $region38: #{tpu_custom_call.1} parent=1 // pred_check
      _
    $region39: #{tpu_custom_call.1} parent=1 // pred_check_branch
      %100 = sbr.rel (0) target = $region41
    $region40: #{tpu_custom_call.1} parent=1 // pred_region
      _
    $region41: #{tpu_custom_call.1} parent=1 // pred_fallthru
      _
    // Predicated region
    $region42: #{tpu_custom_call.1} parent=1 // pred_check
      _
    $region43: #{tpu_custom_call.1} parent=1 // pred_check_branch
      %102 = sbr.rel (0) target = $region45
    $region44: #{tpu_custom_call.1} parent=1 // pred_region
      %103 = dma.done [#allocation3], 32
    $region45: #{tpu_custom_call.1} parent=1 // pred_fallthru
      _
    // Predicated region
    $region46: #{tpu_custom_call.1} parent=1 // pred_check
      _
    $region47: #{tpu_custom_call.1} parent=1 // pred_check_branch
      %105 = sbr.rel (0) target = $region49
    $region48: #{tpu_custom_call.1} parent=1 // pred_region
      %106 = dma.done [#allocation6], 256
    $region49: #{tpu_custom_call.1} parent=1 // pred_fallthru
      _
    // Predicated region
    $region50: #{tpu_custom_call.1} parent=1 // pred_check
      _
    $region51: #{tpu_custom_call.1} parent=1 // pred_check_branch
      %108 = sbr.rel (0) target = $region53
    $region52: #{tpu_custom_call.1} parent=1 // pred_region
      %109 = dma.done [#allocation6], 256
    $region53: #{tpu_custom_call.1} parent=1 // pred_fallthru
      _
    // Predicated region
    $region54: #{tpu_custom_call.1} parent=1 // pred_check
      _
    $region55: #{tpu_custom_call.1} parent=1 // pred_check_branch
      %111 = sbr.rel (0) target = $region57
    $region56: #{tpu_custom_call.1} parent=1 // pred_region
      %112 = dma.done [#allocation9], 256
    $region57: #{tpu_custom_call.1} parent=1 // pred_fallthru
      _
    // Predicated region
    $region58: #{tpu_custom_call.1} parent=1 // pred_check
      _
    $region59: #{tpu_custom_call.1} parent=1 // pred_check_branch
      %114 = sbr.rel (0) target = $region61
    $region60: #{tpu_custom_call.1} parent=1 // pred_region
      %115 = dma.done [#allocation9], 256
    $region61: #{tpu_custom_call.1} parent=1 // pred_fallthru
      _
    // Predicated region
    $region62: #{tpu_custom_call.1} parent=1 // pred_check
      _
    $region63: #{tpu_custom_call.1} parent=1 // pred_check_branch
      %117 = sbr.rel (0) target = $region65
    $region64: #{tpu_custom_call.1} parent=1 // pred_region
      %118 = dma.done [#allocation12], 256
    $region65: #{tpu_custom_call.1} parent=1 // pred_fallthru
      _
    %v120 = vld [vmem:[#allocation5] sm:$0xff]
    %v121 = vld [vmem:[#allocation5 + $0x8] sm:$0xff]
    %v122 = vld [vmem:[#allocation7] sm:$0xff]
    %v123 = vld [vmem:[#allocation7 + $0x8] sm:$0xff]
    %v124 = vld [vmem:[#allocation8] sm:$0xff]
    %v125 = vld [vmem:[#allocation8 + $0x8] sm:$0xff]
    %v126 = vpack.c.bf16 %v121, %v120
    %v127 = vpack.c.bf16 %v123, %v122
    %v128 = vpack.c.bf16 %v125, %v124
    %v129 = vld [vmem:[#allocation10] sm:$0xf]
    %v130 = vld [vmem:[#allocation10 + $0x4] sm:$0xf]
    %v131 = vld [vmem:[#allocation10 + $0x8] sm:$0xf]
    %v132 = vld [vmem:[#allocation10 + $0xc] sm:$0xf]
    %v133 = vld [vmem:[%s5] sm:$0x1]
    %v135 = vlaneseq
    %v136 = vshrl.u32 %v135, 7
    %v137 = vsub.s32 0, %v136
    %v138 = vrot.slane %v133, %v137
    %v144 = vunpack.c.l.b16 %v129
    %v145 = vunpack.c.l.b16 %v130
    %v146 = vunpack.c.l.b16 %v131
    %v147 = vunpack.c.l.b16 %v132
    %v148 = vpack.c.b16 %v145, %v144
    %v149 = vpack.c.b16 %v147, %v146
    %vm152 = vcmask 261120
    %v154 = vsel %vm152, %v126, 0
    %v157 = vsel %vm152, %v127, 0
    %v160 = vsel %vm152, %v128, 0
    %162 = vmatprep.subr.bf16.mxu0 0
    %163 = vmatpush1.bf16.msra.mxu0 0
    %164 = vmatprep.subr.bf16.mxu0 0
    %165 = vmatpush1.bf16.msra.mxu0 0
    %166 = vmatprep.subr.bf16.mxu0 0
    %167 = vmatpush1.bf16.msra.mxu0 0
    %168 = vmatprep.subr.bf16.mxu0 0
    %169 = vmatpush1.bf16.msra.mxu0 0
    %170 = vmatprep.subr.bf16.mxu0 0
    %171 = vmatpush1.bf16.msra.mxu0 0
    %172 = vmatprep.subr.bf16.mxu0 0
    %173 = vmatpush1.bf16.msra.mxu0 0
    %174 = vmatprep.subr.bf16.mxu0 0
    %175 = vmatpush1.bf16.msra.mxu0 %v149
    %176 = vmatprep.subr.bf16.mxu0 0
    %177 = vmatpush1.bf16.msra.mxu0 %v148
    %178 = vmatprep.subr.bf16.mxu0 0
    %179 = vmatpush2.bf16.msra.mxu0 0
    %180 = vmatprep.subr.bf16.mxu0 0
    %181 = vmatpush2.bf16.msra.mxu0 0
    %182 = vmatprep.subr.bf16.mxu0 0
    %183 = vmatpush2.bf16.msra.mxu0 0
    %184 = vmatprep.subr.bf16.mxu0 0
    %185 = vmatpush2.bf16.msra.mxu0 0
    %186 = vmatprep.subr.bf16.mxu0 0
    %187 = vmatpush2.bf16.msra.mxu0 0
    %188 = vmatprep.subr.bf16.mxu0 0
    %189 = vmatpush2.bf16.msra.mxu0 0
    %190 = vmatprep.subr.bf16.mxu0 0
    %191 = vmatpush2.bf16.msra.mxu0 0
    %192 = vmatprep.subr.bf16.mxu0 0
    %193 = vmatpush2.bf16.msra.mxu0 0
    %194 = vmatprep.mubr.bf16.mxu0 0
    %195 = vmatmul.mubr.bf16.gmra.mxu0 %v154
    %v196 = vpop.f32.mrf.mxu0
    %v197 = vadd.f32 %v138, %v196
    %v198 = vpop.f32.mrf.mxu0
    %v199 = vpop.f32.mrf.mxu0
    %v200 = vadd.f32 %v138, %v199
    %v201 = vpop.f32.mrf.mxu0
    %202 = vmatprep.mubr.bf16.mxu0 0
    %203 = vmatmul.mubr.bf16.gmra.mxu0 %v157
    %v204 = vpop.f32.mrf.mxu0
    %v205 = vadd.f32 %v138, %v204
    %v206 = vpop.f32.mrf.mxu0
    %v207 = vpop.f32.mrf.mxu0
    %v208 = vadd.f32 %v138, %v207
    %v209 = vpop.f32.mrf.mxu0
    %210 = vmatprep.mubr.bf16.mxu0 0
    %211 = vmatmul.mubr.bf16.gmra.mxu0 %v160
    %v212 = vpop.f32.mrf.mxu0
    %v213 = vadd.f32 %v138, %v212
    %v214 = vpop.f32.mrf.mxu0
    %v215 = vpop.f32.mrf.mxu0
    %v216 = vadd.f32 %v138, %v215
    %v217 = vpop.f32.mrf.mxu0
    %218 = vdwg.mxu0
    %v219 = vld [vmem:[#allocation2] sm:$0x3]
    %vm220 = vcmp.ne.s32.totalorder %v219, 0
    %v221 = vsel %vm220, 1, 0
    %v223 = vunpack.c.l.s4 1966171168
    %v224 = vunpack.c.0.s8 %v223
    %v225 = vlaneseq
    %v226 = vshrl.u32 %v225, 7
    %v227 = vsub.s32 %v224, %v226
    %v228 = vrot.slane %v221, %v227
    %v229 = vcombine.high %v228, %v228
    %v231 = vunpack.c.l.s4 1966171168
    %v232 = vunpack.c.0.s8 %v231
    %v233 = vlaneseq
    %v234 = vshrl.u32 %v233, 7
    %v235 = vsub.s32 %v232, %v234
    %v236 = vrot.slane %v228, %v235
    %v238 = vunpack.c.l.s4 1966171168
    %v239 = vunpack.c.0.s8 %v238
    %v240 = vlaneseq
    %v241 = vshrl.u32 %v240, 7
    %v242 = vsub.s32 %v239, %v241
    %v243 = vrot.slane %v229, %v242
    %vm244 = vcmp.ne.s32.totalorder %v236, 0
    %vm245 = vcmp.ne.s32.totalorder %v243, 0
    %v246 = vpack.c.bf16 %v197, %v197
    %v247 = vpack.c.bf16 %v200, %v200
    %v248 = vpack.c.bf16 %v205, %v205
    %v249 = vpack.c.bf16 %v208, %v208
    %251 = vrot.lane.b32.xlu0 %v248, 96
    %v252 = vpop.permute.xlu0 %251
    %vm253 = vcmask 64512
    %v255 = vsel %vm253, %v246, 0
    %v258 = vsel %vm253, %v252, 0
    %260 = vmatprep.subr.bf16.mxu0 0
    %261 = vmatpush1.bf16.xpose.msra.mxu0 0
    %262 = vmatprep.subr.bf16.mxu0 0
    %263 = vmatpush1.bf16.xpose.msra.mxu0 0
    %264 = vmatprep.subr.bf16.mxu0 0
    %265 = vmatpush1.bf16.xpose.msra.mxu0 0
    %266 = vmatprep.subr.bf16.mxu0 0
    %267 = vmatpush1.bf16.xpose.msra.mxu0 0
    %268 = vmatprep.subr.bf16.mxu0 0
    %269 = vmatpush1.bf16.xpose.msra.mxu0 0
    %270 = vmatprep.subr.bf16.mxu0 0
    %271 = vmatpush1.bf16.xpose.msra.mxu0 0
    %272 = vmatprep.subr.bf16.mxu0 0
    %273 = vmatpush1.bf16.xpose.msra.mxu0 0
    %274 = vmatprep.subr.bf16.mxu0 0
    %275 = vmatpush1.bf16.xpose.msra.mxu0 %v258
    %276 = vmatprep.subr.bf16.mxu0 0
    %277 = vmatpush2.bf16.xpose.msra.mxu0 0
    %278 = vmatprep.subr.bf16.mxu0 0
    %279 = vmatpush2.bf16.xpose.msra.mxu0 0
    %280 = vmatprep.subr.bf16.mxu0 0
    %281 = vmatpush2.bf16.xpose.msra.mxu0 0
    %282 = vmatprep.subr.bf16.mxu0 0
    %283 = vmatpush2.bf16.xpose.msra.mxu0 0
    %284 = vmatprep.subr.bf16.mxu0 0
    %285 = vmatpush2.bf16.xpose.msra.mxu0 0
    %286 = vmatprep.subr.bf16.mxu0 0
    %287 = vmatpush2.bf16.xpose.msra.mxu0 0
    %288 = vmatprep.subr.bf16.mxu0 0
    %289 = vmatpush2.bf16.xpose.msra.mxu0 0
    %290 = vmatprep.subr.bf16.mxu0 0
    %291 = vmatpush2.bf16.xpose.msra.mxu0 0
    %292 = vmatprep.mubr.bf16.mxu0 0
    %293 = vmatmul.mubr.bf16.gmra.mxu0 %v255
    %v294 = vpop.f32.mrf.mxu0
    %v295 = vadd.f32 0.0, %v294
    %v296 = vpop.f32.mrf.mxu0
    %v297 = vpop.f32.mrf.mxu0
    %v298 = vpop.f32.mrf.mxu0
    %299 = vdwg.mxu0
    %301 = vrot.lane.b32.xlu0 %v249, 96
    %v302 = vpop.permute.xlu0 %301
    %v304 = vsel %vm253, %v247, 0
    %v307 = vsel %vm253, %v302, 0
    %309 = vmatprep.subr.bf16.mxu0 0
    %310 = vmatpush1.bf16.xpose.msra.mxu0 0
    %311 = vmatprep.subr.bf16.mxu0 0
    %312 = vmatpush1.bf16.xpose.msra.mxu0 0
    %313 = vmatprep.subr.bf16.mxu0 0
    %314 = vmatpush1.bf16.xpose.msra.mxu0 0
    %315 = vmatprep.subr.bf16.mxu0 0
    %316 = vmatpush1.bf16.xpose.msra.mxu0 0
    %317 = vmatprep.subr.bf16.mxu0 0
    %318 = vmatpush1.bf16.xpose.msra.mxu0 0
    %319 = vmatprep.subr.bf16.mxu0 0
    %320 = vmatpush1.bf16.xpose.msra.mxu0 0
    %321 = vmatprep.subr.bf16.mxu0 0
    %322 = vmatpush1.bf16.xpose.msra.mxu0 0
    %323 = vmatprep.subr.bf16.mxu0 0
    %324 = vmatpush1.bf16.xpose.msra.mxu0 %v307
    %325 = vmatprep.subr.bf16.mxu0 0
    %326 = vmatpush2.bf16.xpose.msra.mxu0 0
    %327 = vmatprep.subr.bf16.mxu0 0
    %328 = vmatpush2.bf16.xpose.msra.mxu0 0
    %329 = vmatprep.subr.bf16.mxu0 0
    %330 = vmatpush2.bf16.xpose.msra.mxu0 0
    %331 = vmatprep.subr.bf16.mxu0 0
    %332 = vmatpush2.bf16.xpose.msra.mxu0 0
    %333 = vmatprep.subr.bf16.mxu0 0
    %334 = vmatpush2.bf16.xpose.msra.mxu0 0
    %335 = vmatprep.subr.bf16.mxu0 0
    %336 = vmatpush2.bf16.xpose.msra.mxu0 0
    %337 = vmatprep.subr.bf16.mxu0 0
    %338 = vmatpush2.bf16.xpose.msra.mxu0 0
    %339 = vmatprep.subr.bf16.mxu0 0
    %340 = vmatpush2.bf16.xpose.msra.mxu0 0
    %341 = vmatprep.mubr.bf16.mxu0 0
    %342 = vmatmul.mubr.bf16.gmra.mxu0 %v304
    %v343 = vpop.f32.mrf.mxu0
    %v344 = vadd.f32 0.0, %v343
    %v345 = vpop.f32.mrf.mxu0
    %v346 = vpop.f32.mrf.mxu0
    %v347 = vpop.f32.mrf.mxu0
    %348 = vdwg.mxu0
    %v349 = vmul.f32 %v295, 0.35355338
    %v350 = vmul.f32 %v344, 0.35355338
    %v351 = vsel %vm244, 1, 0
    %v352 = vsel %vm245, 1, 0
    %v353 = vlaneseq
    %v354 = vshrl.u32 %v353, 7
    %v355 = vsub.s32 0, %v354
    %v356 = vrot.slane %v351, %v355
    %v357 = vlaneseq
    %v358 = vshrl.u32 %v357, 7
    %v359 = vsub.s32 0, %v358
    %v360 = vrot.slane %v352, %v359
    %vm361 = vcmp.eq.s32.totalorder %v356, 1
    %vm362 = vcmp.eq.s32.totalorder %v360, 1
    %v363 = vsel %vm361, -1e+09, %v349
    %v364 = vsel %vm362, -1e+09, %v350
    %v365 = vsel %vm253, %v363, -inf
    %366 = vmax.xlane.f32.xlu0 %v365
    %v367 = vpop.xlane.xlu0 %366
    %v368 = vsel %vm253, %v364, -inf
    %369 = vmax.xlane.f32.xlu0 %v368
    %v370 = vpop.xlane.xlu0 %369
    %v371 = vsub.f32 %v363, %v367
    %v372 = vsub.f32 %v364, %v370
    %v373 = vmul.f32 %v371, 1.442695
    %v374 = vpow.pop %v373
    %v375 = vmul.f32 %v372, 1.442695
    %v376 = vpow.pop %v375
    %v377 = vsel %vm253, %v374, 0.0
    %378 = vadd.xlane.f32.xlu0 %v377
    %v379 = vpop.xlane.xlu0 %378
    %v380 = vsel %vm253, %v376, 0.0
    %381 = vadd.xlane.f32.xlu0 %v380
    %v382 = vpop.xlane.xlu0 %381
    %v383 = vrcp.pop %v379
    %v384 = vrcp.pop %v382
    %v385 = vmul.f32 %v374, %v383
    %v386 = vmul.f32 %v376, %v384
    %387 = vst.msk [vmem:[#allocation14] sm:$0xff] %vm253, %v385
    %388 = vst.msk [vmem:[#allocation14 + $0x20] sm:$0xff] %vm253, %v386
    %v389 = vpack.c.bf16 %v385, %v385
    %v390 = vpack.c.bf16 %v386, %v386
    %v391 = vpack.c.bf16 %v213, %v213
    %v392 = vpack.c.bf16 %v216, %v216
    %394 = vrot.lane.b32.xlu0 %v391, 64
    %v395 = vpop.permute.xlu0 %394
    %v397 = vsel %vm253, %v389, 0
    %vm399 = vcmask 1043456
    %v401 = vsel %vm399, %v395, 0
    %403 = vmatprep.subr.bf16.mxu0 0
    %404 = vmatpush1.bf16.msra.mxu0 0
    %405 = vmatprep.subr.bf16.mxu0 0
    %406 = vmatpush1.bf16.msra.mxu0 0
    %407 = vmatprep.subr.bf16.mxu0 0
    %408 = vmatpush1.bf16.msra.mxu0 0
    %409 = vmatprep.subr.bf16.mxu0 0
    %410 = vmatpush1.bf16.msra.mxu0 0
    %411 = vmatprep.subr.bf16.mxu0 0
    %412 = vmatpush1.bf16.msra.mxu0 0
    %413 = vmatprep.subr.bf16.mxu0 0
    %414 = vmatpush1.bf16.msra.mxu0 0
    %415 = vmatprep.subr.bf16.mxu0 0
    %416 = vmatpush1.bf16.msra.mxu0 0
    %417 = vmatprep.subr.bf16.mxu0 0
    %418 = vmatpush1.bf16.msra.mxu0 %v401
    %419 = vmatprep.subr.bf16.mxu0 0
    %420 = vmatpush2.bf16.msra.mxu0 0
    %421 = vmatprep.subr.bf16.mxu0 0
    %422 = vmatpush2.bf16.msra.mxu0 0
    %423 = vmatprep.subr.bf16.mxu0 0
    %424 = vmatpush2.bf16.msra.mxu0 0
    %425 = vmatprep.subr.bf16.mxu0 0
    %426 = vmatpush2.bf16.msra.mxu0 0
    %427 = vmatprep.subr.bf16.mxu0 0
    %428 = vmatpush2.bf16.msra.mxu0 0
    %429 = vmatprep.subr.bf16.mxu0 0
    %430 = vmatpush2.bf16.msra.mxu0 0
    %431 = vmatprep.subr.bf16.mxu0 0
    %432 = vmatpush2.bf16.msra.mxu0 0
    %433 = vmatprep.subr.bf16.mxu0 0
    %434 = vmatpush2.bf16.msra.mxu0 0
    %435 = vmatprep.mubr.bf16.mxu0 0
    %436 = vmatmul.mubr.bf16.gmra.mxu0 %v397
    %v437 = vpop.f32.mrf.mxu0
    %v438 = vadd.f32 0.0, %v437
    %v439 = vpop.f32.mrf.mxu0
    %v440 = vpop.f32.mrf.mxu0
    %v441 = vpop.f32.mrf.mxu0
    %442 = vdwg.mxu0
    %444 = vrot.lane.b32.xlu0 %v392, 64
    %v445 = vpop.permute.xlu0 %444
    %v447 = vsel %vm253, %v390, 0
    %v450 = vsel %vm399, %v445, 0
    %452 = vmatprep.subr.bf16.mxu0 0
    %453 = vmatpush1.bf16.msra.mxu0 0
    %454 = vmatprep.subr.bf16.mxu0 0
    %455 = vmatpush1.bf16.msra.mxu0 0
    %456 = vmatprep.subr.bf16.mxu0 0
    %457 = vmatpush1.bf16.msra.mxu0 0
    %458 = vmatprep.subr.bf16.mxu0 0
    %459 = vmatpush1.bf16.msra.mxu0 0
    %460 = vmatprep.subr.bf16.mxu0 0
    %461 = vmatpush1.bf16.msra.mxu0 0
    %462 = vmatprep.subr.bf16.mxu0 0
    %463 = vmatpush1.bf16.msra.mxu0 0
    %464 = vmatprep.subr.bf16.mxu0 0
    %465 = vmatpush1.bf16.msra.mxu0 0
    %466 = vmatprep.subr.bf16.mxu0 0
    %467 = vmatpush1.bf16.msra.mxu0 %v450
    %468 = vmatprep.subr.bf16.mxu0 0
    %469 = vmatpush2.bf16.msra.mxu0 0
    %470 = vmatprep.subr.bf16.mxu0 0
    %471 = vmatpush2.bf16.msra.mxu0 0
    %472 = vmatprep.subr.bf16.mxu0 0
    %473 = vmatpush2.bf16.msra.mxu0 0
    %474 = vmatprep.subr.bf16.mxu0 0
    %475 = vmatpush2.bf16.msra.mxu0 0
    %476 = vmatprep.subr.bf16.mxu0 0
    %477 = vmatpush2.bf16.msra.mxu0 0
    %478 = vmatprep.subr.bf16.mxu0 0
    %479 = vmatpush2.bf16.msra.mxu0 0
    %480 = vmatprep.subr.bf16.mxu0 0
    %481 = vmatpush2.bf16.msra.mxu0 0
    %482 = vmatprep.subr.bf16.mxu0 0
    %483 = vmatpush2.bf16.msra.mxu0 0
    %484 = vmatprep.mubr.bf16.mxu0 0
    %485 = vmatmul.mubr.bf16.gmra.mxu0 %v447
    %v486 = vpop.f32.mrf.mxu0
    %v487 = vadd.f32 0.0, %v486
    %v488 = vpop.f32.mrf.mxu0
    %v489 = vpop.f32.mrf.mxu0
    %v490 = vpop.f32.mrf.mxu0
    %491 = vdwg.mxu0
    %v492 = vpack.c.bf16 %v487, %v438
    %v493 = vld [vmem:[#allocation11] sm:$0xf]
    %495 = vrot.lane.b32.xlu0 %v246, 120
    %v496 = vpop.permute.xlu0 %495
    %497 = vrot.lane.b32.xlu0 %v248, 88
    %v498 = vpop.permute.xlu0 %497
    %v500 = vsel %vm253, %v496, 0
    %v503 = vsel %vm253, %v498, 0
    %505 = vmatprep.subr.bf16.mxu0 0
    %506 = vmatpush1.bf16.xpose.msra.mxu0 0
    %507 = vmatprep.subr.bf16.mxu0 0
    %508 = vmatpush1.bf16.xpose.msra.mxu0 0
    %509 = vmatprep.subr.bf16.mxu0 0
    %510 = vmatpush1.bf16.xpose.msra.mxu0 0
    %511 = vmatprep.subr.bf16.mxu0 0
    %512 = vmatpush1.bf16.xpose.msra.mxu0 0
    %513 = vmatprep.subr.bf16.mxu0 0
    %514 = vmatpush1.bf16.xpose.msra.mxu0 0
    %515 = vmatprep.subr.bf16.mxu0 0
    %516 = vmatpush1.bf16.xpose.msra.mxu0 0
    %517 = vmatprep.subr.bf16.mxu0 0
    %518 = vmatpush1.bf16.xpose.msra.mxu0 0
    %519 = vmatprep.subr.bf16.mxu0 0
    %520 = vmatpush1.bf16.xpose.msra.mxu0 %v503
    %521 = vmatprep.subr.bf16.mxu0 0
    %522 = vmatpush2.bf16.xpose.msra.mxu0 0
    %523 = vmatprep.subr.bf16.mxu0 0
    %524 = vmatpush2.bf16.xpose.msra.mxu0 0
    %525 = vmatprep.subr.bf16.mxu0 0
    %526 = vmatpush2.bf16.xpose.msra.mxu0 0
    %527 = vmatprep.subr.bf16.mxu0 0
    %528 = vmatpush2.bf16.xpose.msra.mxu0 0
    %529 = vmatprep.subr.bf16.mxu0 0
    %530 = vmatpush2.bf16.xpose.msra.mxu0 0
    %531 = vmatprep.subr.bf16.mxu0 0
    %532 = vmatpush2.bf16.xpose.msra.mxu0 0
    %533 = vmatprep.subr.bf16.mxu0 0
    %534 = vmatpush2.bf16.xpose.msra.mxu0 0
    %535 = vmatprep.subr.bf16.mxu0 0
    %536 = vmatpush2.bf16.xpose.msra.mxu0 0
    %537 = vmatprep.mubr.bf16.mxu0 0
    %538 = vmatmul.mubr.bf16.gmra.mxu0 %v500
    %v539 = vpop.f32.mrf.mxu0
    %v540 = vadd.f32 0.0, %v539
    %v541 = vpop.f32.mrf.mxu0
    %v542 = vpop.f32.mrf.mxu0
    %v543 = vpop.f32.mrf.mxu0
    %544 = vdwg.mxu0
    %546 = vrot.lane.b32.xlu0 %v247, 120
    %v547 = vpop.permute.xlu0 %546
    %548 = vrot.lane.b32.xlu0 %v249, 88
    %v549 = vpop.permute.xlu0 %548
    %v551 = vsel %vm253, %v547, 0
    %v554 = vsel %vm253, %v549, 0
    %556 = vmatprep.subr.bf16.mxu0 0
    %557 = vmatpush1.bf16.xpose.msra.mxu0 0
    %558 = vmatprep.subr.bf16.mxu0 0
    %559 = vmatpush1.bf16.xpose.msra.mxu0 0
    %560 = vmatprep.subr.bf16.mxu0 0
    %561 = vmatpush1.bf16.xpose.msra.mxu0 0
    %562 = vmatprep.subr.bf16.mxu0 0
    %563 = vmatpush1.bf16.xpose.msra.mxu0 0
    %564 = vmatprep.subr.bf16.mxu0 0
    %565 = vmatpush1.bf16.xpose.msra.mxu0 0
    %566 = vmatprep.subr.bf16.mxu0 0
    %567 = vmatpush1.bf16.xpose.msra.mxu0 0
    %568 = vmatprep.subr.bf16.mxu0 0
    %569 = vmatpush1.bf16.xpose.msra.mxu0 0
    %570 = vmatprep.subr.bf16.mxu0 0
    %571 = vmatpush1.bf16.xpose.msra.mxu0 %v554
    %572 = vmatprep.subr.bf16.mxu0 0
    %573 = vmatpush2.bf16.xpose.msra.mxu0 0
    %574 = vmatprep.subr.bf16.mxu0 0
    %575 = vmatpush2.bf16.xpose.msra.mxu0 0
    %576 = vmatprep.subr.bf16.mxu0 0
    %577 = vmatpush2.bf16.xpose.msra.mxu0 0
    %578 = vmatprep.subr.bf16.mxu0 0
    %579 = vmatpush2.bf16.xpose.msra.mxu0 0
    %580 = vmatprep.subr.bf16.mxu0 0
    %581 = vmatpush2.bf16.xpose.msra.mxu0 0
    %582 = vmatprep.subr.bf16.mxu0 0
    %583 = vmatpush2.bf16.xpose.msra.mxu0 0
    %584 = vmatprep.subr.bf16.mxu0 0
    %585 = vmatpush2.bf16.xpose.msra.mxu0 0
    %586 = vmatprep.subr.bf16.mxu0 0
    %587 = vmatpush2.bf16.xpose.msra.mxu0 0
    %588 = vmatprep.mubr.bf16.mxu0 0
    %589 = vmatmul.mubr.bf16.gmra.mxu0 %v551
    %v590 = vpop.f32.mrf.mxu0
    %v591 = vadd.f32 0.0, %v590
    %v592 = vpop.f32.mrf.mxu0
    %v593 = vpop.f32.mrf.mxu0
    %v594 = vpop.f32.mrf.mxu0
    %595 = vdwg.mxu0
    %v596 = vmul.f32 %v540, 0.35355338
    %v597 = vmul.f32 %v591, 0.35355338
    %v598 = vsel %vm361, -1e+09, %v596
    %v599 = vsel %vm362, -1e+09, %v597
    %v600 = vsel %vm253, %v598, -inf
    %601 = vmax.xlane.f32.xlu0 %v600
    %v602 = vpop.xlane.xlu0 %601
    %v603 = vsel %vm253, %v599, -inf
    %604 = vmax.xlane.f32.xlu0 %v603
    %v605 = vpop.xlane.xlu0 %604
    %v606 = vsub.f32 %v598, %v602
    %v607 = vsub.f32 %v599, %v605
    %v608 = vmul.f32 %v606, 1.442695
    %v609 = vpow.pop %v608
    %v610 = vmul.f32 %v607, 1.442695
    %v611 = vpow.pop %v610
    %v612 = vsel %vm253, %v609, 0.0
    %613 = vadd.xlane.f32.xlu0 %v612
    %v614 = vpop.xlane.xlu0 %613
    %v615 = vsel %vm253, %v611, 0.0
    %616 = vadd.xlane.f32.xlu0 %v615
    %v617 = vpop.xlane.xlu0 %616
    %v618 = vrcp.pop %v614
    %v619 = vrcp.pop %v617
    %v620 = vmul.f32 %v609, %v618
    %v621 = vmul.f32 %v611, %v619
    %s622 = scalar_lea.vmem [#allocation14], 8
    %623 = vst.msk [vmem:[%s622] sm:$0xff] %vm253, %v620
    %624 = vst.msk [vmem:[%s622 + $0x20] sm:$0xff] %vm253, %v621
    %v625 = vpack.c.bf16 %v620, %v620
    %v626 = vpack.c.bf16 %v621, %v621
    %627 = vrot.lane.b32.xlu0 %v391, 56
    %v628 = vpop.permute.xlu0 %627
    %v630 = vsel %vm253, %v625, 0
    %v633 = vsel %vm399, %v628, 0
    %635 = vmatprep.subr.bf16.mxu0 0
    %636 = vmatpush1.bf16.msra.mxu0 0
    %637 = vmatprep.subr.bf16.mxu0 0
    %638 = vmatpush1.bf16.msra.mxu0 0
    %639 = vmatprep.subr.bf16.mxu0 0
    %640 = vmatpush1.bf16.msra.mxu0 0
    %641 = vmatprep.subr.bf16.mxu0 0
    %642 = vmatpush1.bf16.msra.mxu0 0
    %643 = vmatprep.subr.bf16.mxu0 0
    %644 = vmatpush1.bf16.msra.mxu0 0
    %645 = vmatprep.subr.bf16.mxu0 0
    %646 = vmatpush1.bf16.msra.mxu0 0
    %647 = vmatprep.subr.bf16.mxu0 0
    %648 = vmatpush1.bf16.msra.mxu0 0
    %649 = vmatprep.subr.bf16.mxu0 0
    %650 = vmatpush1.bf16.msra.mxu0 %v633
    %651 = vmatprep.subr.bf16.mxu0 0
    %652 = vmatpush2.bf16.msra.mxu0 0
    %653 = vmatprep.subr.bf16.mxu0 0
    %654 = vmatpush2.bf16.msra.mxu0 0
    %655 = vmatprep.subr.bf16.mxu0 0
    %656 = vmatpush2.bf16.msra.mxu0 0
    %657 = vmatprep.subr.bf16.mxu0 0
    %658 = vmatpush2.bf16.msra.mxu0 0
    %659 = vmatprep.subr.bf16.mxu0 0
    %660 = vmatpush2.bf16.msra.mxu0 0
    %661 = vmatprep.subr.bf16.mxu0 0
    %662 = vmatpush2.bf16.msra.mxu0 0
    %663 = vmatprep.subr.bf16.mxu0 0
    %664 = vmatpush2.bf16.msra.mxu0 0
    %665 = vmatprep.subr.bf16.mxu0 0
    %666 = vmatpush2.bf16.msra.mxu0 0
    %667 = vmatprep.mubr.bf16.mxu0 0
    %668 = vmatmul.mubr.bf16.gmra.mxu0 %v630
    %v669 = vpop.f32.mrf.mxu0
    %v670 = vadd.f32 0.0, %v669
    %v671 = vpop.f32.mrf.mxu0
    %v672 = vpop.f32.mrf.mxu0
    %v673 = vpop.f32.mrf.mxu0
    %674 = vdwg.mxu0
    %675 = vrot.lane.b32.xlu0 %v392, 56
    %v676 = vpop.permute.xlu0 %675
    %v678 = vsel %vm253, %v626, 0
    %v681 = vsel %vm399, %v676, 0
    %683 = vmatprep.subr.bf16.mxu0 0
    %684 = vmatpush1.bf16.msra.mxu0 0
    %685 = vmatprep.subr.bf16.mxu0 0
    %686 = vmatpush1.bf16.msra.mxu0 0
    %687 = vmatprep.subr.bf16.mxu0 0
    %688 = vmatpush1.bf16.msra.mxu0 0
    %689 = vmatprep.subr.bf16.mxu0 0
    %690 = vmatpush1.bf16.msra.mxu0 0
    %691 = vmatprep.subr.bf16.mxu0 0
    %692 = vmatpush1.bf16.msra.mxu0 0
    %693 = vmatprep.subr.bf16.mxu0 0
    %694 = vmatpush1.bf16.msra.mxu0 0
    %695 = vmatprep.subr.bf16.mxu0 0
    %696 = vmatpush1.bf16.msra.mxu0 0
    %697 = vmatprep.subr.bf16.mxu0 0
    %698 = vmatpush1.bf16.msra.mxu0 %v681
    %699 = vmatprep.subr.bf16.mxu0 0
    %700 = vmatpush2.bf16.msra.mxu0 0
    %701 = vmatprep.subr.bf16.mxu0 0
    %702 = vmatpush2.bf16.msra.mxu0 0
    %703 = vmatprep.subr.bf16.mxu0 0
    %704 = vmatpush2.bf16.msra.mxu0 0
    %705 = vmatprep.subr.bf16.mxu0 0
    %706 = vmatpush2.bf16.msra.mxu0 0
    %707 = vmatprep.subr.bf16.mxu0 0
    %708 = vmatpush2.bf16.msra.mxu0 0
    %709 = vmatprep.subr.bf16.mxu0 0
    %710 = vmatpush2.bf16.msra.mxu0 0
    %711 = vmatprep.subr.bf16.mxu0 0
    %712 = vmatpush2.bf16.msra.mxu0 0
    %713 = vmatprep.subr.bf16.mxu0 0
    %714 = vmatpush2.bf16.msra.mxu0 0
    %715 = vmatprep.mubr.bf16.mxu0 0
    %716 = vmatmul.mubr.bf16.gmra.mxu0 %v678
    %v717 = vpop.f32.mrf.mxu0
    %v718 = vadd.f32 0.0, %v717
    %v719 = vpop.f32.mrf.mxu0
    %v720 = vpop.f32.mrf.mxu0
    %v721 = vpop.f32.mrf.mxu0
    %722 = vdwg.mxu0
    %v723 = vpack.c.bf16 %v718, %v670
    %v724 = vld [vmem:[#allocation11 + $0x4] sm:$0xf]
    %v726 = vsel %vm253, %v723, 0
    %v729 = vsel %vm399, %v724, 0
    %731 = vmatprep.subr.bf16.mxu0 0
    %732 = vmatpush1.bf16.msra.mxu0 0
    %733 = vmatprep.subr.bf16.mxu0 0
    %734 = vmatpush1.bf16.msra.mxu0 0
    %735 = vmatprep.subr.bf16.mxu0 0
    %736 = vmatpush1.bf16.msra.mxu0 0
    %737 = vmatprep.subr.bf16.mxu0 0
    %738 = vmatpush1.bf16.msra.mxu0 0
    %739 = vmatprep.subr.bf16.mxu0 0
    %740 = vmatpush1.bf16.msra.mxu0 0
    %741 = vmatprep.subr.bf16.mxu0 0
    %742 = vmatpush1.bf16.msra.mxu0 0
    %743 = vmatprep.subr.bf16.mxu0 0
    %744 = vmatpush1.bf16.msra.mxu0 0
    %745 = vmatprep.subr.bf16.mxu0 0
    %746 = vmatpush1.bf16.msra.mxu0 %v729
    %747 = vmatprep.subr.bf16.mxu0 0
    %748 = vmatpush2.bf16.msra.mxu0 0
    %749 = vmatprep.subr.bf16.mxu0 0
    %750 = vmatpush2.bf16.msra.mxu0 0
    %751 = vmatprep.subr.bf16.mxu0 0
    %752 = vmatpush2.bf16.msra.mxu0 0
    %753 = vmatprep.subr.bf16.mxu0 0
    %754 = vmatpush2.bf16.msra.mxu0 0
    %755 = vmatprep.subr.bf16.mxu0 0
    %756 = vmatpush2.bf16.msra.mxu0 0
    %757 = vmatprep.subr.bf16.mxu0 0
    %758 = vmatpush2.bf16.msra.mxu0 0
    %759 = vmatprep.subr.bf16.mxu0 0
    %760 = vmatpush2.bf16.msra.mxu0 0
    %761 = vmatprep.subr.bf16.mxu0 0
    %762 = vmatpush2.bf16.msra.mxu0 0
    %763 = vmatprep.mubr.bf16.mxu0 0
    %764 = vmatmul.mubr.bf16.gmra.mxu0 %v726
    %v765 = vpop.f32.mrf.mxu0
    %v766 = vadd.f32 0.0, %v765
    %v767 = vpop.f32.mrf.mxu0
    %v768 = vpop.f32.mrf.mxu0
    %v769 = vadd.f32 0.0, %v768
    %v770 = vpop.f32.mrf.mxu0
    %771 = vdwg.mxu0
    %v773 = vsel %vm253, %v492, 0
    %v776 = vsel %vm399, %v493, 0
    %778 = vmatprep.subr.bf16.mxu0 0
    %779 = vmatpush1.bf16.msra.mxu0 0
    %780 = vmatprep.subr.bf16.mxu0 0
    %781 = vmatpush1.bf16.msra.mxu0 0
    %782 = vmatprep.subr.bf16.mxu0 0
    %783 = vmatpush1.bf16.msra.mxu0 0
    %784 = vmatprep.subr.bf16.mxu0 0
    %785 = vmatpush1.bf16.msra.mxu0 0
    %786 = vmatprep.subr.bf16.mxu0 0
    %787 = vmatpush1.bf16.msra.mxu0 0
    %788 = vmatprep.subr.bf16.mxu0 0
    %789 = vmatpush1.bf16.msra.mxu0 0
    %790 = vmatprep.subr.bf16.mxu0 0
    %791 = vmatpush1.bf16.msra.mxu0 0
    %792 = vmatprep.subr.bf16.mxu0 0
    %793 = vmatpush1.bf16.msra.mxu0 %v776
    %794 = vmatprep.subr.bf16.mxu0 0
    %795 = vmatpush2.bf16.msra.mxu0 0
    %796 = vmatprep.subr.bf16.mxu0 0
    %797 = vmatpush2.bf16.msra.mxu0 0
    %798 = vmatprep.subr.bf16.mxu0 0
    %799 = vmatpush2.bf16.msra.mxu0 0
    %800 = vmatprep.subr.bf16.mxu0 0
    %801 = vmatpush2.bf16.msra.mxu0 0
    %802 = vmatprep.subr.bf16.mxu0 0
    %803 = vmatpush2.bf16.msra.mxu0 0
    %804 = vmatprep.subr.bf16.mxu0 0
    %805 = vmatpush2.bf16.msra.mxu0 0
    %806 = vmatprep.subr.bf16.mxu0 0
    %807 = vmatpush2.bf16.msra.mxu0 0
    %808 = vmatprep.subr.bf16.mxu0 0
    %809 = vmatpush2.bf16.msra.mxu0 0
    %810 = vmatprep.mubr.bf16.mxu0 0
    %811 = vmatmul.mubr.bf16.gmra.mxu0 %v773
    %v812 = vpop.f32.mrf.mxu0
    %v813 = vadd.f32 %v766, %v812
    %v814 = vpop.f32.mrf.mxu0
    %v815 = vpop.f32.mrf.mxu0
    %v816 = vadd.f32 %v769, %v815
    %v817 = vpop.f32.mrf.mxu0
    %818 = vdwg.mxu0
    %819 = vrot.lane.b32.xlu0 %v246, 112
    %v820 = vpop.permute.xlu0 %819
    %821 = vrot.lane.b32.xlu0 %v248, 80
    %v822 = vpop.permute.xlu0 %821
    %v824 = vsel %vm253, %v820, 0
    %v827 = vsel %vm253, %v822, 0
    %829 = vmatprep.subr.bf16.mxu0 0
    %830 = vmatpush1.bf16.xpose.msra.mxu0 0
    %831 = vmatprep.subr.bf16.mxu0 0
    %832 = vmatpush1.bf16.xpose.msra.mxu0 0
    %833 = vmatprep.subr.bf16.mxu0 0
    %834 = vmatpush1.bf16.xpose.msra.mxu0 0
    %835 = vmatprep.subr.bf16.mxu0 0
    %836 = vmatpush1.bf16.xpose.msra.mxu0 0
    %837 = vmatprep.subr.bf16.mxu0 0
    %838 = vmatpush1.bf16.xpose.msra.mxu0 0
    %839 = vmatprep.subr.bf16.mxu0 0
    %840 = vmatpush1.bf16.xpose.msra.mxu0 0
    %841 = vmatprep.subr.bf16.mxu0 0
    %842 = vmatpush1.bf16.xpose.msra.mxu0 0
    %843 = vmatprep.subr.bf16.mxu0 0
    %844 = vmatpush1.bf16.xpose.msra.mxu0 %v827
    %845 = vmatprep.subr.bf16.mxu0 0
    %846 = vmatpush2.bf16.xpose.msra.mxu0 0
    %847 = vmatprep.subr.bf16.mxu0 0
    %848 = vmatpush2.bf16.xpose.msra.mxu0 0
    %849 = vmatprep.subr.bf16.mxu0 0
    %850 = vmatpush2.bf16.xpose.msra.mxu0 0
    %851 = vmatprep.subr.bf16.mxu0 0
    %852 = vmatpush2.bf16.xpose.msra.mxu0 0
    %853 = vmatprep.subr.bf16.mxu0 0
    %854 = vmatpush2.bf16.xpose.msra.mxu0 0
    %855 = vmatprep.subr.bf16.mxu0 0
    %856 = vmatpush2.bf16.xpose.msra.mxu0 0
    %857 = vmatprep.subr.bf16.mxu0 0
    %858 = vmatpush2.bf16.xpose.msra.mxu0 0
    %859 = vmatprep.subr.bf16.mxu0 0
    %860 = vmatpush2.bf16.xpose.msra.mxu0 0
    %861 = vmatprep.mubr.bf16.mxu0 0
    %862 = vmatmul.mubr.bf16.gmra.mxu0 %v824
    %v863 = vpop.f32.mrf.mxu0
    %v864 = vadd.f32 0.0, %v863
    %v865 = vpop.f32.mrf.mxu0
    %v866 = vpop.f32.mrf.mxu0
    %v867 = vpop.f32.mrf.mxu0
    %868 = vdwg.mxu0
    %869 = vrot.lane.b32.xlu0 %v247, 112
    %v870 = vpop.permute.xlu0 %869
    %871 = vrot.lane.b32.xlu0 %v249, 80
    %v872 = vpop.permute.xlu0 %871
    %v874 = vsel %vm253, %v870, 0
    %v877 = vsel %vm253, %v872, 0
    %879 = vmatprep.subr.bf16.mxu0 0
    %880 = vmatpush1.bf16.xpose.msra.mxu0 0
    %881 = vmatprep.subr.bf16.mxu0 0
    %882 = vmatpush1.bf16.xpose.msra.mxu0 0
    %883 = vmatprep.subr.bf16.mxu0 0
    %884 = vmatpush1.bf16.xpose.msra.mxu0 0
    %885 = vmatprep.subr.bf16.mxu0 0
    %886 = vmatpush1.bf16.xpose.msra.mxu0 0
    %887 = vmatprep.subr.bf16.mxu0 0
    %888 = vmatpush1.bf16.xpose.msra.mxu0 0
    %889 = vmatprep.subr.bf16.mxu0 0
    %890 = vmatpush1.bf16.xpose.msra.mxu0 0
    %891 = vmatprep.subr.bf16.mxu0 0
    %892 = vmatpush1.bf16.xpose.msra.mxu0 0
    %893 = vmatprep.subr.bf16.mxu0 0
    %894 = vmatpush1.bf16.xpose.msra.mxu0 %v877
    %895 = vmatprep.subr.bf16.mxu0 0
    %896 = vmatpush2.bf16.xpose.msra.mxu0 0
    %897 = vmatprep.subr.bf16.mxu0 0
    %898 = vmatpush2.bf16.xpose.msra.mxu0 0
    %899 = vmatprep.subr.bf16.mxu0 0
    %900 = vmatpush2.bf16.xpose.msra.mxu0 0
    %901 = vmatprep.subr.bf16.mxu0 0
    %902 = vmatpush2.bf16.xpose.msra.mxu0 0
    %903 = vmatprep.subr.bf16.mxu0 0
    %904 = vmatpush2.bf16.xpose.msra.mxu0 0
    %905 = vmatprep.subr.bf16.mxu0 0
    %906 = vmatpush2.bf16.xpose.msra.mxu0 0
    %907 = vmatprep.subr.bf16.mxu0 0
    %908 = vmatpush2.bf16.xpose.msra.mxu0 0
    %909 = vmatprep.subr.bf16.mxu0 0
    %910 = vmatpush2.bf16.xpose.msra.mxu0 0
    %911 = vmatprep.mubr.bf16.mxu0 0
    %912 = vmatmul.mubr.bf16.gmra.mxu0 %v874
    %v913 = vpop.f32.mrf.mxu0
    %v914 = vadd.f32 0.0, %v913
    %v915 = vpop.f32.mrf.mxu0
    %v916 = vpop.f32.mrf.mxu0
    %v917 = vpop.f32.mrf.mxu0
    %918 = vdwg.mxu0
    %v919 = vmul.f32 %v864, 0.35355338
    %v920 = vmul.f32 %v914, 0.35355338
    %v921 = vsel %vm361, -1e+09, %v919
    %v922 = vsel %vm362, -1e+09, %v920
    %v923 = vsel %vm253, %v921, -inf
    %924 = vmax.xlane.f32.xlu0 %v923
    %v925 = vpop.xlane.xlu0 %924
    %v926 = vsel %vm253, %v922, -inf
    %927 = vmax.xlane.f32.xlu0 %v926
    %v928 = vpop.xlane.xlu0 %927
    %v929 = vsub.f32 %v921, %v925
    %v930 = vsub.f32 %v922, %v928
    %v931 = vmul.f32 %v929, 1.442695
    %v932 = vpow.pop %v931
    %v933 = vmul.f32 %v930, 1.442695
    %v934 = vpow.pop %v933
    %v935 = vsel %vm253, %v932, 0.0
    %936 = vadd.xlane.f32.xlu0 %v935
    %v937 = vpop.xlane.xlu0 %936
    %v938 = vsel %vm253, %v934, 0.0
    %939 = vadd.xlane.f32.xlu0 %v938
    %v940 = vpop.xlane.xlu0 %939
    %v941 = vrcp.pop %v937
    %v942 = vrcp.pop %v940
    %v943 = vmul.f32 %v932, %v941
    %v944 = vmul.f32 %v934, %v942
    %s945 = scalar_lea.vmem [#allocation14], 16
    %946 = vst.msk [vmem:[%s945] sm:$0xff] %vm253, %v943
    %947 = vst.msk [vmem:[%s945 + $0x20] sm:$0xff] %vm253, %v944
    %v948 = vpack.c.bf16 %v943, %v943
    %v949 = vpack.c.bf16 %v944, %v944
    %950 = vrot.lane.b32.xlu0 %v391, 48
    %v951 = vpop.permute.xlu0 %950
    %v953 = vsel %vm253, %v948, 0
    %v956 = vsel %vm399, %v951, 0
    %958 = vmatprep.subr.bf16.mxu0 0
    %959 = vmatpush1.bf16.msra.mxu0 0
    %960 = vmatprep.subr.bf16.mxu0 0
    %961 = vmatpush1.bf16.msra.mxu0 0
    %962 = vmatprep.subr.bf16.mxu0 0
    %963 = vmatpush1.bf16.msra.mxu0 0
    %964 = vmatprep.subr.bf16.mxu0 0
    %965 = vmatpush1.bf16.msra.mxu0 0
    %966 = vmatprep.subr.bf16.mxu0 0
    %967 = vmatpush1.bf16.msra.mxu0 0
    %968 = vmatprep.subr.bf16.mxu0 0
    %969 = vmatpush1.bf16.msra.mxu0 0
    %970 = vmatprep.subr.bf16.mxu0 0
    %971 = vmatpush1.bf16.msra.mxu0 0
    %972 = vmatprep.subr.bf16.mxu0 0
    %973 = vmatpush1.bf16.msra.mxu0 %v956
    %974 = vmatprep.subr.bf16.mxu0 0
    %975 = vmatpush2.bf16.msra.mxu0 0
    %976 = vmatprep.subr.bf16.mxu0 0
    %977 = vmatpush2.bf16.msra.mxu0 0
    %978 = vmatprep.subr.bf16.mxu0 0
    %979 = vmatpush2.bf16.msra.mxu0 0
    %980 = vmatprep.subr.bf16.mxu0 0
    %981 = vmatpush2.bf16.msra.mxu0 0
    %982 = vmatprep.subr.bf16.mxu0 0
    %983 = vmatpush2.bf16.msra.mxu0 0
    %984 = vmatprep.subr.bf16.mxu0 0
    %985 = vmatpush2.bf16.msra.mxu0 0
    %986 = vmatprep.subr.bf16.mxu0 0
    %987 = vmatpush2.bf16.msra.mxu0 0
    %988 = vmatprep.subr.bf16.mxu0 0
    %989 = vmatpush2.bf16.msra.mxu0 0
    %990 = vmatprep.mubr.bf16.mxu0 0
    %991 = vmatmul.mubr.bf16.gmra.mxu0 %v953
    %v992 = vpop.f32.mrf.mxu0
    %v993 = vadd.f32 0.0, %v992
    %v994 = vpop.f32.mrf.mxu0
    %v995 = vpop.f32.mrf.mxu0
    %v996 = vpop.f32.mrf.mxu0
    %997 = vdwg.mxu0
    %998 = vrot.lane.b32.xlu0 %v392, 48
    %v999 = vpop.permute.xlu0 %998
    %v1001 = vsel %vm253, %v949, 0
    %v1004 = vsel %vm399, %v999, 0
    %1006 = vmatprep.subr.bf16.mxu0 0
    %1007 = vmatpush1.bf16.msra.mxu0 0
    %1008 = vmatprep.subr.bf16.mxu0 0
    %1009 = vmatpush1.bf16.msra.mxu0 0
    %1010 = vmatprep.subr.bf16.mxu0 0
    %1011 = vmatpush1.bf16.msra.mxu0 0
    %1012 = vmatprep.subr.bf16.mxu0 0
    %1013 = vmatpush1.bf16.msra.mxu0 0
    %1014 = vmatprep.subr.bf16.mxu0 0
    %1015 = vmatpush1.bf16.msra.mxu0 0
    %1016 = vmatprep.subr.bf16.mxu0 0
    %1017 = vmatpush1.bf16.msra.mxu0 0
    %1018 = vmatprep.subr.bf16.mxu0 0
    %1019 = vmatpush1.bf16.msra.mxu0 0
    %1020 = vmatprep.subr.bf16.mxu0 0
    %1021 = vmatpush1.bf16.msra.mxu0 %v1004
    %1022 = vmatprep.subr.bf16.mxu0 0
    %1023 = vmatpush2.bf16.msra.mxu0 0
    %1024 = vmatprep.subr.bf16.mxu0 0
    %1025 = vmatpush2.bf16.msra.mxu0 0
    %1026 = vmatprep.subr.bf16.mxu0 0
    %1027 = vmatpush2.bf16.msra.mxu0 0
    %1028 = vmatprep.subr.bf16.mxu0 0
    %1029 = vmatpush2.bf16.msra.mxu0 0
    %1030 = vmatprep.subr.bf16.mxu0 0
    %1031 = vmatpush2.bf16.msra.mxu0 0
    %1032 = vmatprep.subr.bf16.mxu0 0
    %1033 = vmatpush2.bf16.msra.mxu0 0
    %1034 = vmatprep.subr.bf16.mxu0 0
    %1035 = vmatpush2.bf16.msra.mxu0 0
    %1036 = vmatprep.subr.bf16.mxu0 0
    %1037 = vmatpush2.bf16.msra.mxu0 0
    %1038 = vmatprep.mubr.bf16.mxu0 0
    %1039 = vmatmul.mubr.bf16.gmra.mxu0 %v1001
    %v1040 = vpop.f32.mrf.mxu0
    %v1041 = vadd.f32 0.0, %v1040
    %v1042 = vpop.f32.mrf.mxu0
    %v1043 = vpop.f32.mrf.mxu0
    %v1044 = vpop.f32.mrf.mxu0
    %1045 = vdwg.mxu0
    %v1046 = vpack.c.bf16 %v1041, %v993
    %v1047 = vld [vmem:[#allocation11 + $0x8] sm:$0xf]
    %v1049 = vsel %vm253, %v1046, 0
    %v1052 = vsel %vm399, %v1047, 0
    %1054 = vmatprep.subr.bf16.mxu0 0
    %1055 = vmatpush1.bf16.msra.mxu0 0
    %1056 = vmatprep.subr.bf16.mxu0 0
    %1057 = vmatpush1.bf16.msra.mxu0 0
    %1058 = vmatprep.subr.bf16.mxu0 0
    %1059 = vmatpush1.bf16.msra.mxu0 0
    %1060 = vmatprep.subr.bf16.mxu0 0
    %1061 = vmatpush1.bf16.msra.mxu0 0
    %1062 = vmatprep.subr.bf16.mxu0 0
    %1063 = vmatpush1.bf16.msra.mxu0 0
    %1064 = vmatprep.subr.bf16.mxu0 0
    %1065 = vmatpush1.bf16.msra.mxu0 0
    %1066 = vmatprep.subr.bf16.mxu0 0
    %1067 = vmatpush1.bf16.msra.mxu0 0
    %1068 = vmatprep.subr.bf16.mxu0 0
    %1069 = vmatpush1.bf16.msra.mxu0 %v1052
    %1070 = vmatprep.subr.bf16.mxu0 0
    %1071 = vmatpush2.bf16.msra.mxu0 0
    %1072 = vmatprep.subr.bf16.mxu0 0
    %1073 = vmatpush2.bf16.msra.mxu0 0
    %1074 = vmatprep.subr.bf16.mxu0 0
    %1075 = vmatpush2.bf16.msra.mxu0 0
    %1076 = vmatprep.subr.bf16.mxu0 0
    %1077 = vmatpush2.bf16.msra.mxu0 0
    %1078 = vmatprep.subr.bf16.mxu0 0
    %1079 = vmatpush2.bf16.msra.mxu0 0
    %1080 = vmatprep.subr.bf16.mxu0 0
    %1081 = vmatpush2.bf16.msra.mxu0 0
    %1082 = vmatprep.subr.bf16.mxu0 0
    %1083 = vmatpush2.bf16.msra.mxu0 0
    %1084 = vmatprep.subr.bf16.mxu0 0
    %1085 = vmatpush2.bf16.msra.mxu0 0
    %1086 = vmatprep.mubr.bf16.mxu0 0
    %1087 = vmatmul.mubr.bf16.gmra.mxu0 %v1049
    %v1088 = vpop.f32.mrf.mxu0
    %v1089 = vadd.f32 0.0, %v1088
    %v1090 = vpop.f32.mrf.mxu0
    %v1091 = vpop.f32.mrf.mxu0
    %v1092 = vadd.f32 0.0, %v1091
    %v1093 = vpop.f32.mrf.mxu0
    %1094 = vdwg.mxu0
    %v1095 = vadd.f32 %v813, %v1089
    %v1096 = vadd.f32 %v816, %v1092
    %1097 = vrot.lane.b32.xlu0 %v246, 104
    %v1098 = vpop.permute.xlu0 %1097
    %1099 = vrot.lane.b32.xlu0 %v248, 72
    %v1100 = vpop.permute.xlu0 %1099
    %v1102 = vsel %vm253, %v1098, 0
    %v1105 = vsel %vm253, %v1100, 0
    %1107 = vmatprep.subr.bf16.mxu0 0
    %1108 = vmatpush1.bf16.xpose.msra.mxu0 0
    %1109 = vmatprep.subr.bf16.mxu0 0
    %1110 = vmatpush1.bf16.xpose.msra.mxu0 0
    %1111 = vmatprep.subr.bf16.mxu0 0
    %1112 = vmatpush1.bf16.xpose.msra.mxu0 0
    %1113 = vmatprep.subr.bf16.mxu0 0
    %1114 = vmatpush1.bf16.xpose.msra.mxu0 0
    %1115 = vmatprep.subr.bf16.mxu0 0
    %1116 = vmatpush1.bf16.xpose.msra.mxu0 0
    %1117 = vmatprep.subr.bf16.mxu0 0
    %1118 = vmatpush1.bf16.xpose.msra.mxu0 0
    %1119 = vmatprep.subr.bf16.mxu0 0
    %1120 = vmatpush1.bf16.xpose.msra.mxu0 0
    %1121 = vmatprep.subr.bf16.mxu0 0
    %1122 = vmatpush1.bf16.xpose.msra.mxu0 %v1105
    %1123 = vmatprep.subr.bf16.mxu0 0
    %1124 = vmatpush2.bf16.xpose.msra.mxu0 0
    %1125 = vmatprep.subr.bf16.mxu0 0
    %1126 = vmatpush2.bf16.xpose.msra.mxu0 0
    %1127 = vmatprep.subr.bf16.mxu0 0
    %1128 = vmatpush2.bf16.xpose.msra.mxu0 0
    %1129 = vmatprep.subr.bf16.mxu0 0
    %1130 = vmatpush2.bf16.xpose.msra.mxu0 0
    %1131 = vmatprep.subr.bf16.mxu0 0
    %1132 = vmatpush2.bf16.xpose.msra.mxu0 0
    %1133 = vmatprep.subr.bf16.mxu0 0
    %1134 = vmatpush2.bf16.xpose.msra.mxu0 0
    %1135 = vmatprep.subr.bf16.mxu0 0
    %1136 = vmatpush2.bf16.xpose.msra.mxu0 0
    %1137 = vmatprep.subr.bf16.mxu0 0
    %1138 = vmatpush2.bf16.xpose.msra.mxu0 0
    %1139 = vmatprep.mubr.bf16.mxu0 0
    %1140 = vmatmul.mubr.bf16.gmra.mxu0 %v1102
    %v1141 = vpop.f32.mrf.mxu0
    %v1142 = vadd.f32 0.0, %v1141
    %v1143 = vpop.f32.mrf.mxu0
    %v1144 = vpop.f32.mrf.mxu0
    %v1145 = vpop.f32.mrf.mxu0
    %1146 = vdwg.mxu0
    %1147 = vrot.lane.b32.xlu0 %v247, 104
    %v1148 = vpop.permute.xlu0 %1147
    %1149 = vrot.lane.b32.xlu0 %v249, 72
    %v1150 = vpop.permute.xlu0 %1149
    %v1152 = vsel %vm253, %v1148, 0
    %v1155 = vsel %vm253, %v1150, 0
    %1157 = vmatprep.subr.bf16.mxu0 0
    %1158 = vmatpush1.bf16.xpose.msra.mxu0 0
    %1159 = vmatprep.subr.bf16.mxu0 0
    %1160 = vmatpush1.bf16.xpose.msra.mxu0 0
    %1161 = vmatprep.subr.bf16.mxu0 0
    %1162 = vmatpush1.bf16.xpose.msra.mxu0 0
    %1163 = vmatprep.subr.bf16.mxu0 0
    %1164 = vmatpush1.bf16.xpose.msra.mxu0 0
    %1165 = vmatprep.subr.bf16.mxu0 0
    %1166 = vmatpush1.bf16.xpose.msra.mxu0 0
    %1167 = vmatprep.subr.bf16.mxu0 0
    %1168 = vmatpush1.bf16.xpose.msra.mxu0 0
    %1169 = vmatprep.subr.bf16.mxu0 0
    %1170 = vmatpush1.bf16.xpose.msra.mxu0 0
    %1171 = vmatprep.subr.bf16.mxu0 0
    %1172 = vmatpush1.bf16.xpose.msra.mxu0 %v1155
    %1173 = vmatprep.subr.bf16.mxu0 0
    %1174 = vmatpush2.bf16.xpose.msra.mxu0 0
    %1175 = vmatprep.subr.bf16.mxu0 0
    %1176 = vmatpush2.bf16.xpose.msra.mxu0 0
    %1177 = vmatprep.subr.bf16.mxu0 0
    %1178 = vmatpush2.bf16.xpose.msra.mxu0 0
    %1179 = vmatprep.subr.bf16.mxu0 0
    %1180 = vmatpush2.bf16.xpose.msra.mxu0 0
    %1181 = vmatprep.subr.bf16.mxu0 0
    %1182 = vmatpush2.bf16.xpose.msra.mxu0 0
    %1183 = vmatprep.subr.bf16.mxu0 0
    %1184 = vmatpush2.bf16.xpose.msra.mxu0 0
    %1185 = vmatprep.subr.bf16.mxu0 0
    %1186 = vmatpush2.bf16.xpose.msra.mxu0 0
    %1187 = vmatprep.subr.bf16.mxu0 0
    %1188 = vmatpush2.bf16.xpose.msra.mxu0 0
    %1189 = vmatprep.mubr.bf16.mxu0 0
    %1190 = vmatmul.mubr.bf16.gmra.mxu0 %v1152
    %v1191 = vpop.f32.mrf.mxu0
    %v1192 = vadd.f32 0.0, %v1191
    %v1193 = vpop.f32.mrf.mxu0
    %v1194 = vpop.f32.mrf.mxu0
    %v1195 = vpop.f32.mrf.mxu0
    %1196 = vdwg.mxu0
    %v1197 = vmul.f32 %v1142, 0.35355338
    %v1198 = vmul.f32 %v1192, 0.35355338
    %v1199 = vsel %vm361, -1e+09, %v1197
    %v1200 = vsel %vm362, -1e+09, %v1198
    %v1201 = vsel %vm253, %v1199, -inf
    %1202 = vmax.xlane.f32.xlu0 %v1201
    %v1203 = vpop.xlane.xlu0 %1202
    %v1204 = vsel %vm253, %v1200, -inf
    %1205 = vmax.xlane.f32.xlu0 %v1204
    %v1206 = vpop.xlane.xlu0 %1205
    %v1207 = vsub.f32 %v1199, %v1203
    %v1208 = vsub.f32 %v1200, %v1206
    %v1209 = vmul.f32 %v1207, 1.442695
    %v1210 = vpow.pop %v1209
    %v1211 = vmul.f32 %v1208, 1.442695
    %v1212 = vpow.pop %v1211
    %v1213 = vsel %vm253, %v1210, 0.0
    %1214 = vadd.xlane.f32.xlu0 %v1213
    %v1215 = vpop.xlane.xlu0 %1214
    %v1216 = vsel %vm253, %v1212, 0.0
    %1217 = vadd.xlane.f32.xlu0 %v1216
    %v1218 = vpop.xlane.xlu0 %1217
    %v1219 = vrcp.pop %v1215
    %v1220 = vrcp.pop %v1218
    %v1221 = vmul.f32 %v1210, %v1219
    %v1222 = vmul.f32 %v1212, %v1220
    %s1223 = scalar_lea.vmem [#allocation14], 24
    %1224 = vst.msk [vmem:[%s1223] sm:$0xff] %vm253, %v1221
    %1225 = vst.msk [vmem:[%s1223 + $0x20] sm:$0xff] %vm253, %v1222
    %v1226 = vpack.c.bf16 %v1221, %v1221
    %v1227 = vpack.c.bf16 %v1222, %v1222
    %1228 = vrot.lane.b32.xlu0 %v391, 40
    %v1229 = vpop.permute.xlu0 %1228
    %v1231 = vsel %vm253, %v1226, 0
    %v1234 = vsel %vm399, %v1229, 0
    %1236 = vmatprep.subr.bf16.mxu0 0
    %1237 = vmatpush1.bf16.msra.mxu0 0
    %1238 = vmatprep.subr.bf16.mxu0 0
    %1239 = vmatpush1.bf16.msra.mxu0 0
    %1240 = vmatprep.subr.bf16.mxu0 0
    %1241 = vmatpush1.bf16.msra.mxu0 0
    %1242 = vmatprep.subr.bf16.mxu0 0
    %1243 = vmatpush1.bf16.msra.mxu0 0
    %1244 = vmatprep.subr.bf16.mxu0 0
    %1245 = vmatpush1.bf16.msra.mxu0 0
    %1246 = vmatprep.subr.bf16.mxu0 0
    %1247 = vmatpush1.bf16.msra.mxu0 0
    %1248 = vmatprep.subr.bf16.mxu0 0
    %1249 = vmatpush1.bf16.msra.mxu0 0
    %1250 = vmatprep.subr.bf16.mxu0 0
    %1251 = vmatpush1.bf16.msra.mxu0 %v1234
    %1252 = vmatprep.subr.bf16.mxu0 0
    %1253 = vmatpush2.bf16.msra.mxu0 0
    %1254 = vmatprep.subr.bf16.mxu0 0
    %1255 = vmatpush2.bf16.msra.mxu0 0
    %1256 = vmatprep.subr.bf16.mxu0 0
    %1257 = vmatpush2.bf16.msra.mxu0 0
    %1258 = vmatprep.subr.bf16.mxu0 0
    %1259 = vmatpush2.bf16.msra.mxu0 0
    %1260 = vmatprep.subr.bf16.mxu0 0
    %1261 = vmatpush2.bf16.msra.mxu0 0
    %1262 = vmatprep.subr.bf16.mxu0 0
    %1263 = vmatpush2.bf16.msra.mxu0 0
    %1264 = vmatprep.subr.bf16.mxu0 0
    %1265 = vmatpush2.bf16.msra.mxu0 0
    %1266 = vmatprep.subr.bf16.mxu0 0
    %1267 = vmatpush2.bf16.msra.mxu0 0
    %1268 = vmatprep.mubr.bf16.mxu0 0
    %1269 = vmatmul.mubr.bf16.gmra.mxu0 %v1231
    %v1270 = vpop.f32.mrf.mxu0
    %v1271 = vadd.f32 0.0, %v1270
    %v1272 = vpop.f32.mrf.mxu0
    %v1273 = vpop.f32.mrf.mxu0
    %v1274 = vpop.f32.mrf.mxu0
    %1275 = vdwg.mxu0
    %1276 = vrot.lane.b32.xlu0 %v392, 40
    %v1277 = vpop.permute.xlu0 %1276
    %v1279 = vsel %vm253, %v1227, 0
    %v1282 = vsel %vm399, %v1277, 0
    %1284 = vmatprep.subr.bf16.mxu0 0
    %1285 = vmatpush1.bf16.msra.mxu0 0
    %1286 = vmatprep.subr.bf16.mxu0 0
    %1287 = vmatpush1.bf16.msra.mxu0 0
    %1288 = vmatprep.subr.bf16.mxu0 0
    %1289 = vmatpush1.bf16.msra.mxu0 0
    %1290 = vmatprep.subr.bf16.mxu0 0
    %1291 = vmatpush1.bf16.msra.mxu0 0
    %1292 = vmatprep.subr.bf16.mxu0 0
    %1293 = vmatpush1.bf16.msra.mxu0 0
    %1294 = vmatprep.subr.bf16.mxu0 0
    %1295 = vmatpush1.bf16.msra.mxu0 0
    %1296 = vmatprep.subr.bf16.mxu0 0
    %1297 = vmatpush1.bf16.msra.mxu0 0
    %1298 = vmatprep.subr.bf16.mxu0 0
    %1299 = vmatpush1.bf16.msra.mxu0 %v1282
    %1300 = vmatprep.subr.bf16.mxu0 0
    %1301 = vmatpush2.bf16.msra.mxu0 0
    %1302 = vmatprep.subr.bf16.mxu0 0
    %1303 = vmatpush2.bf16.msra.mxu0 0
    %1304 = vmatprep.subr.bf16.mxu0 0
    %1305 = vmatpush2.bf16.msra.mxu0 0
    %1306 = vmatprep.subr.bf16.mxu0 0
    %1307 = vmatpush2.bf16.msra.mxu0 0
    %1308 = vmatprep.subr.bf16.mxu0 0
    %1309 = vmatpush2.bf16.msra.mxu0 0
    %1310 = vmatprep.subr.bf16.mxu0 0
    %1311 = vmatpush2.bf16.msra.mxu0 0
    %1312 = vmatprep.subr.bf16.mxu0 0
    %1313 = vmatpush2.bf16.msra.mxu0 0
    %1314 = vmatprep.subr.bf16.mxu0 0
    %1315 = vmatpush2.bf16.msra.mxu0 0
    %1316 = vmatprep.mubr.bf16.mxu0 0
    %1317 = vmatmul.mubr.bf16.gmra.mxu0 %v1279
    %v1318 = vpop.f32.mrf.mxu0
    %v1319 = vadd.f32 0.0, %v1318
    %v1320 = vpop.f32.mrf.mxu0
    %v1321 = vpop.f32.mrf.mxu0
    %v1322 = vpop.f32.mrf.mxu0
    %1323 = vdwg.mxu0
    %v1324 = vpack.c.bf16 %v1319, %v1271
    %v1325 = vld [vmem:[#allocation11 + $0xc] sm:$0xf]
    %v1327 = vsel %vm253, %v1324, 0
    %v1330 = vsel %vm399, %v1325, 0
    %1332 = vmatprep.subr.bf16.mxu0 0
    %1333 = vmatpush1.bf16.msra.mxu0 0
    %1334 = vmatprep.subr.bf16.mxu0 0
    %1335 = vmatpush1.bf16.msra.mxu0 0
    %1336 = vmatprep.subr.bf16.mxu0 0
    %1337 = vmatpush1.bf16.msra.mxu0 0
    %1338 = vmatprep.subr.bf16.mxu0 0
    %1339 = vmatpush1.bf16.msra.mxu0 0
    %1340 = vmatprep.subr.bf16.mxu0 0
    %1341 = vmatpush1.bf16.msra.mxu0 0
    %1342 = vmatprep.subr.bf16.mxu0 0
    %1343 = vmatpush1.bf16.msra.mxu0 0
    %1344 = vmatprep.subr.bf16.mxu0 0
    %1345 = vmatpush1.bf16.msra.mxu0 0
    %1346 = vmatprep.subr.bf16.mxu0 0
    %1347 = vmatpush1.bf16.msra.mxu0 %v1330
    %1348 = vmatprep.subr.bf16.mxu0 0
    %1349 = vmatpush2.bf16.msra.mxu0 0
    %1350 = vmatprep.subr.bf16.mxu0 0
    %1351 = vmatpush2.bf16.msra.mxu0 0
    %1352 = vmatprep.subr.bf16.mxu0 0
    %1353 = vmatpush2.bf16.msra.mxu0 0
    %1354 = vmatprep.subr.bf16.mxu0 0
    %1355 = vmatpush2.bf16.msra.mxu0 0
    %1356 = vmatprep.subr.bf16.mxu0 0
    %1357 = vmatpush2.bf16.msra.mxu0 0
    %1358 = vmatprep.subr.bf16.mxu0 0
    %1359 = vmatpush2.bf16.msra.mxu0 0
    %1360 = vmatprep.subr.bf16.mxu0 0
    %1361 = vmatpush2.bf16.msra.mxu0 0
    %1362 = vmatprep.subr.bf16.mxu0 0
    %1363 = vmatpush2.bf16.msra.mxu0 0
    %1364 = vmatprep.mubr.bf16.mxu0 0
    %1365 = vmatmul.mubr.bf16.gmra.mxu0 %v1327
    %v1366 = vpop.f32.mrf.mxu0
    %v1367 = vadd.f32 0.0, %v1366
    %v1368 = vpop.f32.mrf.mxu0
    %v1369 = vpop.f32.mrf.mxu0
    %v1370 = vadd.f32 0.0, %v1369
    %v1371 = vpop.f32.mrf.mxu0
    %1372 = vdwg.mxu0
    %v1373 = vadd.f32 %v1095, %v1367
    %v1374 = vadd.f32 %v1096, %v1370
    %v1375 = vld [vmem:[%s7] sm:$0x1]
    %v1377 = vlaneseq
    %v1378 = vshrl.u32 %v1377, 7
    %v1379 = vsub.s32 0, %v1378
    %v1380 = vrot.slane %v1375, %v1379
    %v1382 = vadd.f32 %v1373, %v1380
    %v1383 = vadd.f32 %v1374, %v1380
    %v1384 = vadd.f32 %v1382, %v120
    %v1385 = vadd.f32 %v1383, %v121
    %v1386 = vsel %vm152, %v1384, 0.0
    %1387 = vadd.xlane.f32.xlu0 %v1386
    %v1388 = vpop.xlane.xlu0 %1387
    %v1389 = vsel %vm152, %v1385, 0.0
    %1390 = vadd.xlane.f32.xlu0 %v1389
    %v1391 = vpop.xlane.xlu0 %1390
    %v1392 = vrcp.pop 32.0
    %v1393 = vmul.f32 %v1388, %v1392
    %v1394 = vmul.f32 %v1391, %v1392
    %v1395 = vsub.f32 %v1384, %v1393
    %v1396 = vsub.f32 %v1385, %v1394
    %v1397 = vmul.f32 %v1395, %v1395
    %v1398 = vmul.f32 %v1396, %v1396
    %v1399 = vsel %vm152, %v1397, 0.0
    %1400 = vadd.xlane.f32.xlu0 %v1399
    %v1401 = vpop.xlane.xlu0 %1400
    %v1402 = vsel %vm152, %v1398, 0.0
    %1403 = vadd.xlane.f32.xlu0 %v1402
    %v1404 = vpop.xlane.xlu0 %1403
    %v1405 = vmul.f32 %v1401, %v1392
    %v1406 = vmul.f32 %v1404, %v1392
    %v1407 = vadd.f32 %v1405, 1e-05
    %v1408 = vadd.f32 %v1406, 1e-05
    %v1409 = vrsqrt.pop %v1407
    %v1410 = vrsqrt.pop %v1408
    %v1411 = vmul.f32 %v1395, %v1409
    %v1412 = vmul.f32 %v1396, %v1410
    %v1413 = vld [vmem:[%s8] sm:$0x1]
    %v1415 = vlaneseq
    %v1416 = vshrl.u32 %v1415, 7
    %v1417 = vsub.s32 0, %v1416
    %v1418 = vrot.slane %v1413, %v1417
    %v1420 = vmul.f32 %v1411, %v1418
    %v1421 = vmul.f32 %v1412, %v1418
    %v1422 = vld [vmem:[%s9] sm:$0x1]
    %v1424 = vlaneseq
    %v1425 = vshrl.u32 %v1424, 7
    %v1426 = vsub.s32 0, %v1425
    %v1427 = vrot.slane %v1422, %v1426
    %v1429 = vadd.f32 %v1420, %v1427
    %v1430 = vadd.f32 %v1421, %v1427
    %1431 = vst.msk [vmem:[#allocation13] sm:$0xff] %vm152, %v1429
    %1432 = vst.msk [vmem:[#allocation13 + $0x8] sm:$0xff] %vm152, %v1430
    // Predicated region
    $region66: #{tpu_custom_call.1} parent=1 // pred_check
      _
    $region67: #{tpu_custom_call.1} parent=1 // pred_check_branch
      %1434 = sbr.rel (0) target = $region69
    $region68: #{tpu_custom_call.1} parent=1 // pred_region
      %s1436 = ssub.s32 256, 256
      %1437 = vsyncadd [#allocation4], %s1436
      %s1438 = sshll.u32 [#allocation13], 4
      %s1439 = int_to_ptr.vmem [resolvable:$true] %s1438
      %1444 = dma.vmem_to_hbm [thread:$0]  %s1439, 256, %s10, [#allocation4], 128, 128, 8
    $region69: #{tpu_custom_call.1} parent=1 // pred_fallthru
      _
    // Predicated region
    $region70: #{tpu_custom_call.1} parent=1 // pred_check
      _
    $region71: #{tpu_custom_call.1} parent=1 // pred_check_branch
      %1446 = sbr.rel (0) target = $region73
    $region72: #{tpu_custom_call.1} parent=1 // pred_region
      %s1448 = ssub.s32 1024, 1024
      %1449 = vsyncadd [#allocation15], %s1448
      %s1450 = sshll.u32 [#allocation14], 4
      %s1451 = int_to_ptr.vmem [resolvable:$true] %s1450
      %1456 = dma.vmem_to_hbm [thread:$0]  %s1451, 1024, %s11, [#allocation15], 128, 128, 8
    $region73: #{tpu_custom_call.1} parent=1 // pred_fallthru
      _
    // Predicated region
    $region74: #{tpu_custom_call.1} parent=1 // pred_check
      _
    $region75: #{tpu_custom_call.1} parent=1 // pred_check_branch
      %1458 = sbr.rel (0) target = $region77
    $region76: #{tpu_custom_call.1} parent=1 // pred_region
      %1459 = dma.done [#allocation4], 256
    $region77: #{tpu_custom_call.1} parent=1 // pred_fallthru
      _
    // Predicated region
    $region78: #{tpu_custom_call.1} parent=1 // pred_check
      _
    $region79: #{tpu_custom_call.1} parent=1 // pred_check_branch
      %1461 = sbr.rel (0) target = $region81
    $region80: #{tpu_custom_call.1} parent=1 // pred_region
      %1462 = dma.done [#allocation15], 1024
    $region81: #{tpu_custom_call.1} parent=1 // pred_fallthru
      _
    %1463 = vsyncpa [#allocation3], 1
    %1464 = vsyncpa [#allocation6], 1
    %1465 = vsyncpa [#allocation9], 1
    %1466 = vsyncpa [#allocation12], 1
    %1467 = vsyncpa [#allocation4], 1
    %1468 = vsyncpa [#allocation15], 1

</llo_original>
